<compile_context>
chip_gen: v5e
topology: v5e:2x2
jax: 0.10.0
libtpu: 0.0.40
codegen_flags: <defaults>
</compile_context>

<pallas_src>
import jax
import jax.numpy as jnp
from jax.experimental import pallas as pl
from jax.experimental.pallas import tpu as pltpu


_SUB = 128  # rows per in-kernel compute chunk (bounds vreg liveness)


# ----------------------------- Pallas kernel ------------------------------ #

def _composer_kernel(pc_ref, ph_ref, w_ref, b_ref, c_ref, h_ref):
    """One (tile_b, H) batch tile of nodes, computed in 128-row sub-chunks."""
    H = c_ref.shape[1]
    n_sub = c_ref.shape[0] // _SUB

    w = w_ref[...]                              # (H, 3H) fused gate weights (resident)
    b = b_ref[...].astype(jnp.float32)          # (1, 3H) fused bias

    def body(s, carry):
        r = pl.multiple_of(s * _SUB, _SUB)
        ph = ph_ref[pl.ds(r, _SUB), :]
        # One fused MXU push for all three gates (i | pf | u), f32 accumulation.
        gates = jnp.dot(ph, w, preferred_element_type=jnp.float32) + b
        # H == 128 -> each gate slice is a 128-lane-aligned block (free view).
        i = jax.nn.sigmoid(gates[:, 0 * H:1 * H])
        pf = jax.nn.sigmoid(gates[:, 1 * H:2 * H])
        u = jnp.tanh(gates[:, 2 * H:3 * H])
        # pc loaded late: short live range -> less spill pressure at big tiles.
        c = i * u + pf * pc_ref[pl.ds(r, _SUB), :].astype(jnp.float32)
        c_ref[pl.ds(r, _SUB), :] = c.astype(c_ref.dtype)
        h_ref[pl.ds(r, _SUB), :] = jnp.tanh(c).astype(h_ref.dtype)
        return carry

    jax.lax.fori_loop(0, n_sub, body, 0, unroll=True)


# ------------------------------ Wrapper ----------------------------------- #

def _choose_tile_b(batch, max_tile):
    """Pick the batch-tile size.

    As large as possible (up to max_tile, multiple of 128) so each grid step
    amortizes the per-step overhead, but keep >= 2 grid steps whenever there
    is more than one 128-row block of work so the "parallel" batch axis can
    split across v7x's two TensorCores.
    """
    tile = min(max_tile, pl.cdiv(batch, _SUB) * _SUB)
    if batch > _SUB and pl.cdiv(batch, tile) < 2:
        tile = max(_SUB, pl.cdiv(pl.cdiv(batch, 2), _SUB) * _SUB)
    return tile


def make_composer(mem_dim, *, max_tile_b=512):
    """Batched BinaryTreeTopDownComposer.forward over a whole level of nodes.

    Accepts f32 or bf16 pc / ph / w_fused (outputs follow pc's dtype); all
    sigmoid/tanh/elementwise math is done in f32 inside the kernel.
    """
    H = mem_dim
    assert H % 128 == 0, "mem_dim must be a multiple of 128 (lane width)"
    assert max_tile_b % _SUB == 0

    def call(pc, ph, w_fused, b_fused):
        B = pc.shape[0]
        tile_b = _choose_tile_b(B, max_tile_b)
        grid = (pl.cdiv(B, tile_b),)      # ragged last block handled by Pallas
        out_dtype = pc.dtype

        # Raise the scoped-VMEM limit only if the footprint nears v5e's
        # 16 MiB default (streamed tiles are double-buffered by Pallas).
        isz = jnp.dtype(pc.dtype).itemsize
        est = (4 * 2 * tile_b * H * isz               # pc/ph/c/h, 2 buffers each
               + 2 * (H + 1) * 3 * H * 4              # resident fused W, b
               + 2 * _SUB * 3 * H * 4)                # in-kernel gates temporaries
        cp_kwargs = dict(dimension_semantics=("parallel",))
        if est > 14 * 1024 * 1024:
            cp_kwargs["vmem_limit_bytes"] = int(min(2 * est, 96 * 1024 * 1024))

        return pl.pallas_call(
            _composer_kernel,
            out_shape=(jax.ShapeDtypeStruct((B, H), out_dtype),
                       jax.ShapeDtypeStruct((B, H), out_dtype)),
            grid_spec=pltpu.PrefetchScalarGridSpec(
                num_scalar_prefetch=0,
                grid=grid,
                in_specs=[
                    pl.BlockSpec((tile_b, H), lambda i: (i, 0)),   # pc tile
                    pl.BlockSpec((tile_b, H), lambda i: (i, 0)),   # ph tile
                    pl.BlockSpec((H, 3 * H), lambda i: (0, 0)),    # fused W (resident)
                    pl.BlockSpec((1, 3 * H), lambda i: (0, 0)),    # fused b (resident)
                ],
                out_specs=[
                    pl.BlockSpec((tile_b, H), lambda i: (i, 0)),   # c (lane-dense)
                    pl.BlockSpec((tile_b, H), lambda i: (i, 0)),   # h (lane-dense)
                ],
            ),
            compiler_params=pltpu.CompilerParams(**cp_kwargs),
        )(pc, ph, w_fused, b_fused)

    return jax.jit(call)


# ------------------------- Pure-JAX reference ----------------------------- #

def composer_ref(pc, ph, params):
    """Exact torch semantics: three separate Linears (weight stored (out,in))."""
    (wi, bi, wf, bf, wu, bu) = params
    hp = jax.lax.Precision.HIGHEST
    i = jax.nn.sigmoid(jnp.dot(ph, wi.T, precision=hp) + bi)
    pf = jax.nn.sigmoid(jnp.dot(ph, wf.T, precision=hp) + bf)
    u = jnp.tanh(jnp.dot(ph, wu.T, precision=hp) + bu)
    c = i * u + pf * pc
    h = jnp.tanh(c)
    return c, h


# --------------------------------- Main ------------------------------------ #

if __name__ == "__main__":
    MEM_DIM = 128     # mem_dim: 128 keeps gate slices / outputs lane-aligned
    IN_DIM = 128      # in_dim is stored by the module but unused by forward
    BATCH = 200       # number of (pc, ph) node states composed in one call

    key = jax.random.PRNGKey(0)
    ks = jax.random.split(key, 8)

    def init(k, shape, scale=0.1):
        return (scale * jax.random.normal(k, shape)).astype(jnp.float32)

    # torch nn.Linear layout: weight (out_features, in_features), bias (out,)
    wi = init(ks[0], (MEM_DIM, MEM_DIM)); bi = init(ks[1], (MEM_DIM,))
    wf = init(ks[2], (MEM_DIM, MEM_DIM)); bf = init(ks[3], (MEM_DIM,))
    wu = init(ks[4], (MEM_DIM, MEM_DIM)); bu = init(ks[5], (MEM_DIM,))

    pc = init(ks[6], (BATCH, MEM_DIM), scale=1.0)   # parent cell states
    ph = init(ks[7], (BATCH, MEM_DIM), scale=1.0)   # parent hidden states

    # Host-side fusion: one (H, 3H) weight (y = ph @ W) and one (1, 3H) bias.
    w_fused = jnp.concatenate([wi.T, wf.T, wu.T], axis=1)
    b_fused = jnp.concatenate([bi, bf, bu])[None, :]

    c_ref, h_ref = composer_ref(pc, ph, (wi, bi, wf, bf, wu, bu))

    composer = make_composer(MEM_DIM, max_tile_b=512)

    # f32 path (matches the torch module's numerics).
    c, h = composer(pc, ph, w_fused, b_fused)
    jax.block_until_ready((c, h))
    assert jnp.allclose(c, c_ref, atol=1e-3), "c mismatch (f32)"
    assert jnp.allclose(h, h_ref, atol=1e-3), "h mismatch (f32)"

    # bf16-streamed path (halves HBM traffic on v6e/v7x; elementwise math
    # stays f32 in-kernel, so it is safe on v5e too).
    pc16, ph16, w16 = (x.astype(jnp.bfloat16) for x in (pc, ph, w_fused))
    c16, h16 = composer(pc16, ph16, w16, b_fused)
    jax.block_until_ready((c16, h16))
    assert jnp.allclose(c16.astype(jnp.float32), c_ref, atol=7e-2, rtol=5e-2), \
        "c mismatch (bf16)"
    assert jnp.allclose(h16.astype(jnp.float32), h_ref, atol=7e-2, rtol=5e-2), \
        "h mismatch (bf16)"

    print("KERNEL_OK")
</pallas_src>

<mosaic_0001>
module attributes {stable_mosaic.version = 11 : i64} {
  func.func @_composer_kernel(%arg0: i32, %arg1: memref<128x128xf32, #tpu.memory_space<vmem>>, %arg2: memref<128x128xf32, #tpu.memory_space<vmem>>, %arg3: memref<128x384xf32, #tpu.memory_space<vmem>>, %arg4: memref<1x384xf32, #tpu.memory_space<vmem>>, %arg5: memref<128x128xf32, #tpu.memory_space<vmem>>, %arg6: memref<128x128xf32, #tpu.memory_space<vmem>>) attributes {dimension_semantics = [#tpu.dimension_semantics<parallel>], iteration_bounds = array<i64: 2>, scalar_prefetch = 0 : i64, scratch_operands = 0 : i64, tpu.core_type = #tpu.core_type<tc>, window_params = [{transform_indices = @transform_0, window_bounds = array<i64: 128, 128>}, {transform_indices = @transform_1, window_bounds = array<i64: 128, 128>}, {pipeline_mode = #tpu.pipeline_mode<synchronous>, transform_indices = @transform_2, window_bounds = array<i64: 128, 384>}, {pipeline_mode = #tpu.pipeline_mode<synchronous>, transform_indices = @transform_3, window_bounds = array<i64: 1, 384>}, {transform_indices = @transform_4, window_bounds = array<i64: 128, 128>}, {transform_indices = @transform_5, window_bounds = array<i64: 128, 128>}]} {
    %c0 = arith.constant 0 : index
    %c0_0 = arith.constant 0 : index
    %0 = vector.load %arg3[%c0, %c0_0] : memref<128x384xf32, #tpu.memory_space<vmem>>, vector<128x384xf32>
    %c0_1 = arith.constant 0 : index
    %c0_2 = arith.constant 0 : index
    %1 = vector.load %arg4[%c0_1, %c0_2] : memref<1x384xf32, #tpu.memory_space<vmem>>, vector<1x384xf32>
    %c0_i32 = arith.constant 0 : i32
    %c128_i32 = arith.constant 128 : i32
    %2 = arith.muli %c0_i32, %c128_i32 : i32
    %3 = tpu.assume_multiple %2, 128 : i32
    %4 = arith.index_cast %3 : i32 to index
    %c0_3 = arith.constant 0 : index
    %5 = vector.load %arg2[%4, %c0_3] : memref<128x128xf32, #tpu.memory_space<vmem>>, vector<128x128xf32>
    %cst = arith.constant dense<0.000000e+00> : vector<128x384xf32>
    %6 = tpu.matmul %5, %0, %cst {dimension_numbers = #tpu.dot_dimension_numbers<[1], [0], [0], [1], [0, 0, 1, 1], [], []>} : vector<128x128xf32>, vector<128x384xf32>, vector<128x384xf32> -> vector<128x384xf32>
    %7 = vector.broadcast %1 : vector<1x384xf32> to vector<128x384xf32>
    %8 = arith.addf %6, %7 : vector<128x384xf32>
    %9 = vector.extract_strided_slice %8 {offsets = [0, 0], sizes = [128, 128], strides = [1, 1]} : vector<128x384xf32> to vector<128x128xf32>
    %10 = arith.negf %9 : vector<128x128xf32>
    %11 = math.exp %10 : vector<128x128xf32>
    %cst_4 = arith.constant 1.000000e+00 : f32
    %12 = vector.broadcast %cst_4 : f32 to vector<128x128xf32>
    %13 = arith.addf %12, %11 : vector<128x128xf32>
    %14 = arith.divf %12, %13 : vector<128x128xf32>
    %15 = vector.extract_strided_slice %8 {offsets = [0, 128], sizes = [128, 128], strides = [1, 1]} : vector<128x384xf32> to vector<128x128xf32>
    %16 = arith.negf %15 : vector<128x128xf32>
    %17 = math.exp %16 : vector<128x128xf32>
    %cst_5 = arith.constant 1.000000e+00 : f32
    %18 = vector.broadcast %cst_5 : f32 to vector<128x128xf32>
    %19 = arith.addf %18, %17 : vector<128x128xf32>
    %20 = arith.divf %18, %19 : vector<128x128xf32>
    %21 = vector.extract_strided_slice %8 {offsets = [0, 256], sizes = [128, 128], strides = [1, 1]} : vector<128x384xf32> to vector<128x128xf32>
    %22 = math.tanh %21 : vector<128x128xf32>
    %23 = arith.mulf %14, %22 : vector<128x128xf32>
    %24 = arith.index_cast %3 : i32 to index
    %c0_6 = arith.constant 0 : index
    %25 = vector.load %arg1[%24, %c0_6] : memref<128x128xf32, #tpu.memory_space<vmem>>, vector<128x128xf32>
    %26 = arith.mulf %20, %25 : vector<128x128xf32>
    %27 = arith.addf %23, %26 : vector<128x128xf32>
    %28 = arith.index_cast %3 : i32 to index
    %c0_7 = arith.constant 0 : index
    %29 = vector.load %arg5[%28, %c0_7] : memref<128x128xf32, #tpu.memory_space<vmem>>, vector<128x128xf32>
    tpu.vector_store %arg5[%28, %c0_7], %27 {strides = array<i32>} : memref<128x128xf32, #tpu.memory_space<vmem>>, vector<128x128xf32>,
    %30 = math.tanh %27 : vector<128x128xf32>
    %31 = arith.index_cast %3 : i32 to index
    %c0_8 = arith.constant 0 : index
    %32 = vector.load %arg6[%31, %c0_8] : memref<128x128xf32, #tpu.memory_space<vmem>>, vector<128x128xf32>
    tpu.vector_store %arg6[%31, %c0_8], %30 {strides = array<i32>} : memref<128x128xf32, #tpu.memory_space<vmem>>, vector<128x128xf32>,
    %c1_i32 = arith.constant 1 : i32
    return
  }
  func.func @transform_0(%arg0: i32) -> (i32, i32) {
    %c0_i32 = arith.constant 0 : i32
    %c0_i32_0 = arith.constant 0 : i32
    return %arg0, %c0_i32 : i32, i32
  }
  func.func @transform_1(%arg0: i32) -> (i32, i32) {
    %c0_i32 = arith.constant 0 : i32
    %c0_i32_0 = arith.constant 0 : i32
    return %arg0, %c0_i32 : i32, i32
  }
  func.func @transform_2(%arg0: i32) -> (i32, i32) {
    %c0_i32 = arith.constant 0 : i32
    %c0_i32_0 = arith.constant 0 : i32
    %c0_i32_1 = arith.constant 0 : i32
    return %c0_i32, %c0_i32_0 : i32, i32
  }
  func.func @transform_3(%arg0: i32) -> (i32, i32) {
    %c0_i32 = arith.constant 0 : i32
    %c0_i32_0 = arith.constant 0 : i32
    %c0_i32_1 = arith.constant 0 : i32
    return %c0_i32, %c0_i32_0 : i32, i32
  }
  func.func @transform_4(%arg0: i32) -> (i32, i32) {
    %c0_i32 = arith.constant 0 : i32
    %c0_i32_0 = arith.constant 0 : i32
    return %arg0, %c0_i32 : i32, i32
  }
  func.func @transform_5(%arg0: i32) -> (i32, i32) {
    %c0_i32 = arith.constant 0 : i32
    %c0_i32_0 = arith.constant 0 : i32
    return %arg0, %c0_i32 : i32, i32
  }
}

</mosaic_0001>

<llo_original>
// kernel: call.1
$region0: #{call.1}
  #allocation0 [shape = 'u32[]', space=smem, size = 0x4, offset = 0x4, fixed_abs, tag = 'smem constant byte address 0x4 - core index']
  #allocation1 [shape = 'u32[72,128]{1,0:T(1,128)}', space=vmem, size = 0x9000, scoped, tag = 'internal scratch']
  %s0 = inlined_call_operand.hbm [shape: f32[200,128], index: 0, kind: input, shape index: {}]
  %s1 = inlined_call_operand.hbm [shape: f32[200,128], index: 1, kind: input, shape index: {}]
  %s2 = inlined_call_operand.hbm [shape: f32[128,384], index: 2, kind: input, shape index: {}]
  %s3 = inlined_call_operand.hbm [shape: f32[1,384], index: 3, kind: input, shape index: {}]
  %s4 = inlined_call_operand.hbm [shape: f32[200,128], index: 4, kind: output, shape index: {0}]
  %s5 = inlined_call_operand.hbm [shape: f32[200,128], index: 5, kind: output, shape index: {1}]
  %6 = xla_tuple %s4, %s5
  %s7 = sld [smem:[#allocation0]]
  $region73: #{call.1} parent=0
    _
  %s9 = ssub.s32 1, %s7
  %s10 = scalar_select 0, %s9, %s7
  $region1: #{call.1} parent=0
    #allocation2 [shape = 'u8[131072]{0}', space=vmem, size = 0x20000, scoped, tag = 'input window, operand 0']
    #allocation3 [shape = 's32[2]{0}', space=sflag, size = 0x8, scoped, tag = 'scoped memory for call.1']
    #allocation4 [shape = 's32[2]{0}', space=sflag, size = 0x8, scoped, tag = 'scoped memory for call.1']
    #allocation5 [shape = 'u8[131072]{0}', space=vmem, size = 0x20000, scoped, tag = 'input window, operand 1']
    #allocation6 [shape = 's32[2]{0}', space=sflag, size = 0x8, scoped, tag = 'scoped memory for call.1']
    #allocation7 [shape = 'u8[196608]{0}', space=vmem, size = 0x30000, scoped, tag = 'input window, operand 2, single buffered']
    #allocation8 [shape = 'u8[1536]{0}', space=vmem, size = 0x800, scoped, tag = 'input window, operand 3, single buffered']
    #allocation9 [shape = 's32[1]{0}', space=sflag, size = 0x4, scoped, tag = 'scoped memory for call.1']
    #allocation10 [shape = 'u8[131072]{0}', space=vmem, size = 0x20000, scoped, tag = 'output window, operand 0']
    #allocation11 [shape = 'u8[131072]{0}', space=vmem, size = 0x20000, scoped, tag = 'output window, operand 1']
    #allocation12 [shape = 's32[2]{0}', space=sflag, size = 0x8, scoped, tag = 'scoped memory for call.1']
    %11 = vsyncpa [#allocation3], 0
    %s12 = scalar_lea.sflag [#allocation3], 1
    %13 = vsyncpa %s12, 0
    %14 = vsyncpa [#allocation6], 0
    %s15 = scalar_lea.sflag [#allocation6], 1
    %16 = vsyncpa %s15, 0
    %17 = vsyncpa [#allocation9], 0
    %18 = vsyncpa [#allocation4], 0
    %s19 = scalar_lea.sflag [#allocation4], 1
    %20 = vsyncpa %s19, 0
    %21 = vsyncpa [#allocation12], 0
    %s22 = scalar_lea.sflag [#allocation12], 1
    %23 = vsyncpa %s22, 0
    loop: start=0, step=1, limit=4
    $region2: #{call.1} parent=1 // loop_pre_header
      _
    $region3: #{call.1} parent=1 // loop_header
      %s25 = sphi 0, %s29
      %p26 = scmp.ge.s32.totalorder %s25, 4
      %s35 = sphi 0, %s37
      %s38 = sphi 0, %s35
      %s39 = sphi 0, %s38
      %s55 = sphi 0, %s39
      %s61 = sphi 0, %s63
      %s64 = sphi 0, %s61
      %s65 = sphi 0, %s64
      %s81 = sphi 0, %s65
      %s85 = sphi 0, %s85
      %s87 = sphi 0, %s85
      %s88 = sphi 0, %s87
      %s102 = sphi 0, %s88
      %s106 = sphi 0, %s106
      %s108 = sphi 0, %s106
      %s109 = sphi 0, %s108
      %s123 = sphi 0, %s109
      %s129 = sphi 0, %s131
      %s132 = sphi 0, %s129
      %s133 = sphi 0, %s132
      %s149 = sphi 0, %s133
      %s155 = sphi 0, %s157
      %s158 = sphi 0, %s155
      %s159 = sphi 0, %s158
      %s175 = sphi 0, %s159
    $region4: #{call.1} parent=1 // loop_header_branch
      %28 = sbr.rel (%p26) target = $region8
    $region5: #{call.1} parent=1 // loop_body
      %s30 = ssub.s32 %s25, 1
      %s31 = ssub.s32 %s25, 2
      %s32 = sadd.s32 %s25, 1
      %s33 = ssub.s32 %s25, %s32
      %p34 = scmp.eq.s32.totalorder %s33, 0
      %s36 = sadd.s32 %s35, 1
      %s37 = scalar_select %p34, %s35, %s36
      %p40 = pneg %p34
      %p41 = scmp.eq.s32.totalorder %s25, 1
      %p42 = por %p40, %p41
      %p43 = scmp.ne.s32.totalorder %s35, %s38
      %p44 = scmp.eq.s32.totalorder %s25, 0
      %p45 = por %p43, %p44
      %p46 = scmp.ne.s32.totalorder %s35, %s38
      %p47 = scmp.eq.s32.totalorder %s30, 1
      %p48 = por %p46, %p47
      %p49 = scmp.ne.s32.totalorder %s38, %s39
      %p50 = scmp.eq.s32.totalorder %s30, 0
      %p51 = por %p49, %p50
      %p52 = scmp.ne.s32.totalorder %s38, %s39
      %p53 = scmp.eq.s32.totalorder %s31, 1
      %p54 = por %p52, %p53
      %p56 = scmp.ne.s32.totalorder %s39, %s55
      %p57 = scmp.eq.s32.totalorder %s31, 0
      %p58 = por %p56, %p57
      %s59 = ssub.s32 %s25, %s32
      %p60 = scmp.eq.s32.totalorder %s59, 0
      %s62 = sadd.s32 %s61, 1
      %s63 = scalar_select %p60, %s61, %s62
      %p66 = pneg %p60
      %p67 = scmp.eq.s32.totalorder %s25, 1
      %p68 = por %p66, %p67
      %p69 = scmp.ne.s32.totalorder %s61, %s64
      %p70 = scmp.eq.s32.totalorder %s25, 0
      %p71 = por %p69, %p70
      %p72 = scmp.ne.s32.totalorder %s61, %s64
      %p73 = scmp.eq.s32.totalorder %s30, 1
      %p74 = por %p72, %p73
      %p75 = scmp.ne.s32.totalorder %s64, %s65
      %p76 = scmp.eq.s32.totalorder %s30, 0
      %p77 = por %p75, %p76
      %p78 = scmp.ne.s32.totalorder %s64, %s65
      %p79 = scmp.eq.s32.totalorder %s31, 1
      %p80 = por %p78, %p79
      %p82 = scmp.ne.s32.totalorder %s65, %s81
      %p83 = scmp.eq.s32.totalorder %s31, 0
      %p84 = por %p82, %p83
      %s86 = sadd.s32 %s85, 1
      %p89 = scmp.eq.s32.totalorder %s25, 1
      %p90 = scmp.ne.s32.totalorder %s85, %s87
      %p91 = scmp.eq.s32.totalorder %s25, 0
      %p92 = por %p90, %p91
      %p93 = scmp.ne.s32.totalorder %s85, %s87
      %p94 = scmp.eq.s32.totalorder %s30, 1
      %p95 = por %p93, %p94
      %p96 = scmp.ne.s32.totalorder %s87, %s88
      %p97 = scmp.eq.s32.totalorder %s30, 0
      %p98 = por %p96, %p97
      %p99 = scmp.ne.s32.totalorder %s87, %s88
      %p100 = scmp.eq.s32.totalorder %s31, 1
      %p101 = por %p99, %p100
      %p103 = scmp.ne.s32.totalorder %s88, %s102
      %p104 = scmp.eq.s32.totalorder %s31, 0
      %p105 = por %p103, %p104
      %s107 = sadd.s32 %s106, 1
      %p110 = scmp.eq.s32.totalorder %s25, 1
      %p111 = scmp.ne.s32.totalorder %s106, %s108
      %p112 = scmp.eq.s32.totalorder %s25, 0
      %p113 = por %p111, %p112
      %p114 = scmp.ne.s32.totalorder %s106, %s108
      %p115 = scmp.eq.s32.totalorder %s30, 1
      %p116 = por %p114, %p115
      %p117 = scmp.ne.s32.totalorder %s108, %s109
      %p118 = scmp.eq.s32.totalorder %s30, 0
      %p119 = por %p117, %p118
      %p120 = scmp.ne.s32.totalorder %s108, %s109
      %p121 = scmp.eq.s32.totalorder %s31, 1
      %p122 = por %p120, %p121
      %p124 = scmp.ne.s32.totalorder %s109, %s123
      %p125 = scmp.eq.s32.totalorder %s31, 0
      %p126 = por %p124, %p125
      %s127 = ssub.s32 %s25, %s32
      %p128 = scmp.eq.s32.totalorder %s127, 0
      %s130 = sadd.s32 %s129, 1
      %s131 = scalar_select %p128, %s129, %s130
      %p134 = pneg %p128
      %p135 = scmp.eq.s32.totalorder %s25, 1
      %p136 = por %p134, %p135
      %p137 = scmp.ne.s32.totalorder %s129, %s132
      %p138 = scmp.eq.s32.totalorder %s25, 0
      %p139 = por %p137, %p138
      %p140 = scmp.ne.s32.totalorder %s129, %s132
      %p141 = scmp.eq.s32.totalorder %s30, 1
      %p142 = por %p140, %p141
      %p143 = scmp.ne.s32.totalorder %s132, %s133
      %p144 = scmp.eq.s32.totalorder %s30, 0
      %p145 = por %p143, %p144
      %p146 = scmp.ne.s32.totalorder %s132, %s133
      %p147 = scmp.eq.s32.totalorder %s31, 1
      %p148 = por %p146, %p147
      %p150 = scmp.ne.s32.totalorder %s133, %s149
      %p151 = scmp.eq.s32.totalorder %s31, 0
      %p152 = por %p150, %p151
      %s153 = ssub.s32 %s25, %s32
      %p154 = scmp.eq.s32.totalorder %s153, 0
      %s156 = sadd.s32 %s155, 1
      %s157 = scalar_select %p154, %s155, %s156
      %p160 = pneg %p154
      %p161 = scmp.eq.s32.totalorder %s25, 1
      %p162 = por %p160, %p161
      %p163 = scmp.ne.s32.totalorder %s155, %s158
      %p164 = scmp.eq.s32.totalorder %s25, 0
      %p165 = por %p163, %p164
      %p166 = scmp.ne.s32.totalorder %s155, %s158
      %p167 = scmp.eq.s32.totalorder %s30, 1
      %p168 = por %p166, %p167
      %p169 = scmp.ne.s32.totalorder %s158, %s159
      %p170 = scmp.eq.s32.totalorder %s30, 0
      %p171 = por %p169, %p170
      %p172 = scmp.ne.s32.totalorder %s158, %s159
      %p173 = scmp.eq.s32.totalorder %s31, 1
      %p174 = por %p172, %p173
      %p176 = scmp.ne.s32.totalorder %s159, %s175
      %p177 = scmp.eq.s32.totalorder %s31, 0
      %p178 = por %p176, %p177
      %p179 = scmp.le.s32.totalorder 1, %s25
      %p180 = scmp.lt.s32.totalorder %s25, 3
      %p181 = pnand %p179, %p180
      %p182 = pneg %p181
      // Predicated region
      $region9: #{call.1} parent=5 // pred_check
        _
      $region10: #{call.1} parent=5 // pred_check_branch
        %184 = sbr.rel (%p181) target = $region12
      $region11: #{call.1} parent=5 // pred_region
        %s185 = ssub.s32 %s25, 1
        // Predicated region
        $region13: #{call.1} parent=11 // pred_check
          %p186 = pneg %p98
        $region14: #{call.1} parent=11 // pred_check_branch
          %188 = sbr.rel (%p186) target = $region16
        $region15: #{call.1} parent=11 // pred_region
          %190 = vsyncadd [#allocation6], 0
          %s191 = sshll.u32 %s2, 4
          %s192 = int_to_ptr.hbm [resolvable:$true] %s191
          %s193 = sshll.u32 [#allocation7], 4
          %s194 = int_to_ptr.vmem [resolvable:$true] %s193
          %199 = dma.hbm_to_vmem [thread:$0]  %s192, 6144, %s194, [#allocation6], 384, 384, 24
        $region16: #{call.1} parent=11 // pred_fallthru
          _
        // Predicated region
        $region17: #{call.1} parent=11 // pred_check
          %p200 = pneg %p119
        $region18: #{call.1} parent=11 // pred_check_branch
          %202 = sbr.rel (%p200) target = $region20
        $region19: #{call.1} parent=11 // pred_region
          %204 = vsyncadd [#allocation9], 0
          %s206 = sshll.u32 %s3, 4
          %s207 = int_to_ptr.hbm [resolvable:$true] %s206
          %s208 = sshll.u32 [#allocation8], 4
          %s209 = int_to_ptr.vmem [resolvable:$true] %s208
          %211 = dma.hbm_to_vmem [thread:$0]  %s207, 48, %s209, [#allocation9]
        $region20: #{call.1} parent=11 // pred_fallthru
          _
      $region12: #{call.1} parent=5 // pred_fallthru
        _
      %p212 = scmp.lt.s32.totalorder %s25, 2
      // Predicated region
      $region21: #{call.1} parent=5 // pred_check
        %p213 = pneg %p212
      $region22: #{call.1} parent=5 // pred_check_branch
        %215 = sbr.rel (%p213) target = $region24
      $region23: #{call.1} parent=5 // pred_region
        // Predicated region
        $region25: #{call.1} parent=23 // pred_check
          %p216 = pneg %p45
        $region26: #{call.1} parent=23 // pred_check_branch
          %218 = sbr.rel (%p216) target = $region28
        $region27: #{call.1} parent=23 // pred_region
          %s219 = sand.u32 %s35, 1
          %s220 = scalar_lea.sflag [#allocation3], %s219
          %s221 = sand.u32 %s35, 1
          %s222 = smul.addr %s221, 128
          %s223 = scalar_lea.vmem [#allocation2], %s222
          %s224 = smul.u32 16, %s25
          %s225 = ssub.s32 25, %s224
          %p226 = scmp.lt.s32.totalorder %s225, 16
          %s227 = scalar_select %p226, %s225, 16
          %s228 = smul.u32 8, %s227
          %s229 = ssub.s32 128, %s228
          %s230 = sshll.u32 %s229, 4
          %231 = vsyncadd %s220, %s230
          %p232 = scmp.ne.s32.totalorder 0, %s228
          %s233 = smul.addr %s224, 8
          %s234 = scalar_lea.hbm %s0, %s233
          %s235 = smul.u32 8, %s227
          %s236 = sshll.u32 %s234, 4
          %s237 = int_to_ptr.hbm [resolvable:$true] %s236
          %s238 = sshll.u32 %s223, 4
          %s239 = int_to_ptr.vmem [resolvable:$true] %s238
          %s240 = sshll.u32 %s235, 4
          %244 = dma.hbm_to_vmem [thread:$0]  (%p232), %s237, %s240, %s239, %s220, 128, 128, 8
        $region28: #{call.1} parent=23 // pred_fallthru
          _
        // Predicated region
        $region29: #{call.1} parent=23 // pred_check
          %p245 = pneg %p71
        $region30: #{call.1} parent=23 // pred_check_branch
          %247 = sbr.rel (%p245) target = $region32
        $region31: #{call.1} parent=23 // pred_region
          %s248 = sand.u32 %s25, 1
          %s249 = scalar_lea.sflag [#allocation6], %s248
          %s250 = sand.u32 %s61, 1
          %s251 = smul.addr %s250, 128
          %s252 = scalar_lea.vmem [#allocation5], %s251
          %s253 = smul.u32 16, %s25
          %s254 = ssub.s32 25, %s253
          %p255 = scmp.lt.s32.totalorder %s254, 16
          %s256 = scalar_select %p255, %s254, 16
          %s257 = smul.u32 8, %s256
          %s258 = ssub.s32 128, %s257
          %s259 = sshll.u32 %s258, 4
          %260 = vsyncadd %s249, %s259
          %p261 = scmp.ne.s32.totalorder 0, %s257
          %s262 = smul.addr %s253, 8
          %s263 = scalar_lea.hbm %s1, %s262
          %s264 = smul.u32 8, %s256
          %s265 = sshll.u32 %s263, 4
          %s266 = int_to_ptr.hbm [resolvable:$true] %s265
          %s267 = sshll.u32 %s252, 4
          %s268 = int_to_ptr.vmem [resolvable:$true] %s267
          %s269 = sshll.u32 %s264, 4
          %273 = dma.hbm_to_vmem [thread:$0]  (%p261), %s266, %s269, %s268, %s249, 128, 128, 8
        $region32: #{call.1} parent=23 // pred_fallthru
          _
      $region24: #{call.1} parent=5 // pred_fallthru
        _
      %p274 = scmp.le.s32.totalorder 1, %s25
      %p275 = scmp.lt.s32.totalorder %s25, 3
      %p276 = pnand %p274, %p275
      %p277 = pneg %p276
      // Predicated region
      $region33: #{call.1} parent=5 // pred_check
        _
      $region34: #{call.1} parent=5 // pred_check_branch
        %279 = sbr.rel (%p276) target = $region36
      $region35: #{call.1} parent=5 // pred_region
        %s280 = ssub.s32 %s25, 1
        %s281 = sand.u32 %s38, 1
        %s282 = scalar_lea.sflag [#allocation3], %s281
        %s283 = sand.u32 %s38, 1
        %s284 = smul.addr %s283, 128
        %s285 = scalar_lea.vmem [#allocation2], %s284
        // Predicated region
        $region37: #{call.1} parent=35 // pred_check
          %p286 = pneg %p51
        $region38: #{call.1} parent=35 // pred_check_branch
          %288 = sbr.rel (%p286) target = $region40
        $region39: #{call.1} parent=35 // pred_region
          %290 = dma.done %s282, 2048
        $region40: #{call.1} parent=35 // pred_fallthru
          _
        %s291 = sand.u32 %s30, 1
        %s292 = scalar_lea.sflag [#allocation6], %s291
        %s293 = sand.u32 %s64, 1
        %s294 = smul.addr %s293, 128
        %s295 = scalar_lea.vmem [#allocation5], %s294
        // Predicated region
        $region41: #{call.1} parent=35 // pred_check
          %p296 = pneg %p77
        $region42: #{call.1} parent=35 // pred_check_branch
          %298 = sbr.rel (%p296) target = $region44
        $region43: #{call.1} parent=35 // pred_region
          %300 = dma.done %s292, 2048
        $region44: #{call.1} parent=35 // pred_fallthru
          _
        // Predicated region
        $region45: #{call.1} parent=35 // pred_check
          %p301 = pneg %p98
        $region46: #{call.1} parent=35 // pred_check_branch
          %303 = sbr.rel (%p301) target = $region48
        $region47: #{call.1} parent=35 // pred_region
          %305 = dma.done [#allocation6], 6144
        $region48: #{call.1} parent=35 // pred_fallthru
          _
        // Predicated region
        $region49: #{call.1} parent=35 // pred_check
          %p306 = pneg %p119
        $region50: #{call.1} parent=35 // pred_check_branch
          %308 = sbr.rel (%p306) target = $region52
        $region51: #{call.1} parent=35 // pred_region
          %310 = dma.done [#allocation9], 48
        $region52: #{call.1} parent=35 // pred_fallthru
          _
        %s311 = sand.u32 %s38, 1
        %s312 = scalar_lea.sflag [#allocation3], %s311
        %s313 = sand.u32 %s38, 1
        %s314 = smul.addr %s313, 128
        %s315 = scalar_lea.vmem [#allocation2], %s314
        %p316 = pneg %p51
        %p317 = pneg %p48
        %s318 = sand.u32 %s30, 1
        %s319 = scalar_lea.sflag [#allocation6], %s318
        %s320 = sand.u32 %s64, 1
        %s321 = smul.addr %s320, 128
        %s322 = scalar_lea.vmem [#allocation5], %s321
        %p323 = pneg %p77
        %p324 = pneg %p74
        %p325 = pneg %p98
        %p326 = pneg %p95
        %p327 = pneg %p119
        %p328 = pneg %p116
        %p329 = pneg %p145
        %p330 = pneg %p142
        %s331 = sand.u32 %s132, 1
        %s332 = scalar_lea.sflag [#allocation4], %s331
        %s333 = sand.u32 %s132, 1
        %s334 = smul.addr %s333, 128
        %s335 = scalar_lea.vmem [#allocation10], %s334
        %p336 = pneg %p171
        %p337 = pneg %p168
        %s338 = sand.u32 %s158, 1
        %s339 = scalar_lea.sflag [#allocation12], %s338
        %s340 = sand.u32 %s158, 1
        %s341 = smul.addr %s340, 128
        %s342 = scalar_lea.vmem [#allocation11], %s341
        %s343 = smul.u32 16, %s30
        %s344 = ssub.s32 25, %s343
        %p345 = scmp.lt.s32.totalorder %s344, 16
        %s346 = scalar_select %p345, %s344, 16
        %s347 = smul.u32 8, %s346
        %s348 = smul.u32 16, %s30
        %s349 = ssub.s32 25, %s348
        %p350 = scmp.lt.s32.totalorder %s349, 16
        %s351 = scalar_select %p350, %s349, 16
        %s352 = smul.u32 8, %s351
        %s353 = smul.u32 16, %s30
        %s354 = ssub.s32 25, %s353
        %p355 = scmp.lt.s32.totalorder %s354, 16
        %s356 = scalar_select %p355, %s354, 16
        %s357 = smul.u32 8, %s356
        %s358 = smul.u32 16, %s30
        %s359 = ssub.s32 25, %s358
        %p360 = scmp.lt.s32.totalorder %s359, 16
        %s361 = scalar_select %p360, %s359, 16
        %s362 = smul.u32 8, %s361
        %v363 = vld [vmem:[#allocation7] sm:$0xff]
        %v364 = vld [vmem:[#allocation7 + $0x8] sm:$0xff]
        %v365 = vld [vmem:[#allocation7 + $0x10] sm:$0xff]
        %v366 = vld [vmem:[#allocation7 + $0x18] sm:$0xff]
        %v367 = vld [vmem:[#allocation7 + $0x20] sm:$0xff]
        %v368 = vld [vmem:[#allocation7 + $0x28] sm:$0xff]
        %v369 = vld [vmem:[#allocation7 + $0x30] sm:$0xff]
        %v370 = vld [vmem:[#allocation7 + $0x38] sm:$0xff]
        %v371 = vld [vmem:[#allocation7 + $0x40] sm:$0xff]
        %v372 = vld [vmem:[#allocation7 + $0x48] sm:$0xff]
        %v373 = vld [vmem:[#allocation7 + $0x50] sm:$0xff]
        %v374 = vld [vmem:[#allocation7 + $0x58] sm:$0xff]
        %v375 = vld [vmem:[#allocation7 + $0x60] sm:$0xff]
        %v376 = vld [vmem:[#allocation7 + $0x68] sm:$0xff]
        %v377 = vld [vmem:[#allocation7 + $0x70] sm:$0xff]
        %v378 = vld [vmem:[#allocation7 + $0x78] sm:$0xff]
        %v379 = vld [vmem:[#allocation7 + $0x80] sm:$0xff]
        %v380 = vld [vmem:[#allocation7 + $0x88] sm:$0xff]
        %v381 = vld [vmem:[#allocation7 + $0x90] sm:$0xff]
        %v382 = vld [vmem:[#allocation7 + $0x98] sm:$0xff]
        %v383 = vld [vmem:[#allocation7 + $0xa0] sm:$0xff]
        %v384 = vld [vmem:[#allocation7 + $0xa8] sm:$0xff]
        %v385 = vld [vmem:[#allocation7 + $0xb0] sm:$0xff]
        %v386 = vld [vmem:[#allocation7 + $0xb8] sm:$0xff]
        %v387 = vld [vmem:[#allocation7 + $0xc0] sm:$0xff]
        %v388 = vld [vmem:[#allocation7 + $0xc8] sm:$0xff]
        %v389 = vld [vmem:[#allocation7 + $0xd0] sm:$0xff]
        %v390 = vld [vmem:[#allocation7 + $0xd8] sm:$0xff]
        %v391 = vld [vmem:[#allocation7 + $0xe0] sm:$0xff]
        %v392 = vld [vmem:[#allocation7 + $0xe8] sm:$0xff]
        %v393 = vld [vmem:[#allocation7 + $0xf0] sm:$0xff]
        %v394 = vld [vmem:[#allocation7 + $0xf8] sm:$0xff]
        %v395 = vld [vmem:[#allocation7 + $0x100] sm:$0xff]
        %v396 = vld [vmem:[#allocation7 + $0x108] sm:$0xff]
        %v397 = vld [vmem:[#allocation7 + $0x110] sm:$0xff]
        %v398 = vld [vmem:[#allocation7 + $0x118] sm:$0xff]
        %v399 = vld [vmem:[#allocation7 + $0x120] sm:$0xff]
        %v400 = vld [vmem:[#allocation7 + $0x128] sm:$0xff]
        %v401 = vld [vmem:[#allocation7 + $0x130] sm:$0xff]
        %v402 = vld [vmem:[#allocation7 + $0x138] sm:$0xff]
        %v403 = vld [vmem:[#allocation7 + $0x140] sm:$0xff]
        %v404 = vld [vmem:[#allocation7 + $0x148] sm:$0xff]
        %v405 = vld [vmem:[#allocation7 + $0x150] sm:$0xff]
        %v406 = vld [vmem:[#allocation7 + $0x158] sm:$0xff]
        %v407 = vld [vmem:[#allocation7 + $0x160] sm:$0xff]
        %v408 = vld [vmem:[#allocation7 + $0x168] sm:$0xff]
        %v409 = vld [vmem:[#allocation7 + $0x170] sm:$0xff]
        %v410 = vld [vmem:[#allocation7 + $0x178] sm:$0xff]
        %v411 = vld [vmem:[#allocation8] sm:$0x7]
        %v412 = vld [vmem:[%s295] sm:$0xff]
        %v413 = vld [vmem:[%s295 + $0x8] sm:$0xff]
        %v414 = vld [vmem:[%s295 + $0x10] sm:$0xff]
        %v415 = vld [vmem:[%s295 + $0x18] sm:$0xff]
        %v416 = vld [vmem:[%s295 + $0x20] sm:$0xff]
        %v417 = vld [vmem:[%s295 + $0x28] sm:$0xff]
        %v418 = vld [vmem:[%s295 + $0x30] sm:$0xff]
        %v419 = vld [vmem:[%s295 + $0x38] sm:$0xff]
        %v420 = vld [vmem:[%s295 + $0x40] sm:$0xff]
        %v421 = vld [vmem:[%s295 + $0x48] sm:$0xff]
        %v422 = vld [vmem:[%s295 + $0x50] sm:$0xff]
        %v423 = vld [vmem:[%s295 + $0x58] sm:$0xff]
        %v424 = vld [vmem:[%s295 + $0x60] sm:$0xff]
        %v425 = vld [vmem:[%s295 + $0x68] sm:$0xff]
        %v426 = vld [vmem:[%s295 + $0x70] sm:$0xff]
        %v427 = vld [vmem:[%s295 + $0x78] sm:$0xff]
        %v429 = vperm.slane %v411, 0
        %v430 = vperm.slane %v411, 1
        %v431 = vperm.slane %v411, 2
        %435 = vmatpush.msra.mxu0 %v408
        %436 = vmatpush.msra.mxu0 %v405
        %437 = vmatpush.msra.mxu0 %v402
        %438 = vmatpush.msra.mxu0 %v399
        %439 = vmatpush.msra.mxu0 %v396
        %440 = vmatpush.msra.mxu0 %v393
        %441 = vmatpush.msra.mxu0 %v390
        %442 = vmatpush.msra.mxu0 %v387
        %443 = vmatpush.msra.mxu0 %v384
        %444 = vmatpush.msra.mxu0 %v381
        %445 = vmatpush.msra.mxu0 %v378
        %446 = vmatpush.msra.mxu0 %v375
        %447 = vmatpush.msra.mxu0 %v372
        %448 = vmatpush.msra.mxu0 %v369
        %449 = vmatpush.msra.mxu0 %v366
        %450 = vmatpush.msra.mxu0 %v363
        %451 = vmatmul.f32.gmra.mxu0 %v412
        %v452 = vpop.f32.mrf.mxu0
        %v453 = vadd.f32 %v429, %v452
        %454 = vmatmul.f32.gmra.mxu0 %v413
        %v455 = vpop.f32.mrf.mxu0
        %v456 = vadd.f32 %v429, %v455
        %457 = vmatmul.f32.gmra.mxu0 %v414
        %v458 = vpop.f32.mrf.mxu0
        %v459 = vadd.f32 %v429, %v458
        %460 = vmatmul.f32.gmra.mxu0 %v415
        %v461 = vpop.f32.mrf.mxu0
        %v462 = vadd.f32 %v429, %v461
        %463 = vmatmul.f32.gmra.mxu0 %v416
        %v464 = vpop.f32.mrf.mxu0
        %v465 = vadd.f32 %v429, %v464
        %466 = vmatmul.f32.gmra.mxu0 %v417
        %v467 = vpop.f32.mrf.mxu0
        %v468 = vadd.f32 %v429, %v467
        %469 = vmatmul.f32.gmra.mxu0 %v418
        %v470 = vpop.f32.mrf.mxu0
        %v471 = vadd.f32 %v429, %v470
        %472 = vmatmul.f32.gmra.mxu0 %v419
        %v473 = vpop.f32.mrf.mxu0
        %v474 = vadd.f32 %v429, %v473
        %475 = vmatmul.f32.gmra.mxu0 %v420
        %v476 = vpop.f32.mrf.mxu0
        %v477 = vadd.f32 %v429, %v476
        %478 = vmatmul.f32.gmra.mxu0 %v421
        %v479 = vpop.f32.mrf.mxu0
        %v480 = vadd.f32 %v429, %v479
        %481 = vmatmul.f32.gmra.mxu0 %v422
        %v482 = vpop.f32.mrf.mxu0
        %v483 = vadd.f32 %v429, %v482
        %484 = vmatmul.f32.gmra.mxu0 %v423
        %v485 = vpop.f32.mrf.mxu0
        %v486 = vadd.f32 %v429, %v485
        %487 = vmatmul.f32.gmra.mxu0 %v424
        %v488 = vpop.f32.mrf.mxu0
        %v489 = vadd.f32 %v429, %v488
        %490 = vmatmul.f32.gmra.mxu0 %v425
        %v491 = vpop.f32.mrf.mxu0
        %v492 = vadd.f32 %v429, %v491
        %493 = vmatmul.f32.gmra.mxu0 %v426
        %v494 = vpop.f32.mrf.mxu0
        %v495 = vadd.f32 %v429, %v494
        %496 = vmatmul.f32.gmra.mxu0 %v427
        %v497 = vpop.f32.mrf.mxu0
        %v498 = vadd.f32 %v429, %v497
        %499 = vdwg.mxu0
        %500 = vmatpush.msra.mxu0 %v409
        %501 = vmatpush.msra.mxu0 %v406
        %502 = vmatpush.msra.mxu0 %v403
        %503 = vmatpush.msra.mxu0 %v400
        %504 = vmatpush.msra.mxu0 %v397
        %505 = vmatpush.msra.mxu0 %v394
        %506 = vmatpush.msra.mxu0 %v391
        %507 = vmatpush.msra.mxu0 %v388
        %508 = vmatpush.msra.mxu0 %v385
        %509 = vmatpush.msra.mxu0 %v382
        %510 = vmatpush.msra.mxu0 %v379
        %511 = vmatpush.msra.mxu0 %v376
        %512 = vmatpush.msra.mxu0 %v373
        %513 = vmatpush.msra.mxu0 %v370
        %514 = vmatpush.msra.mxu0 %v367
        %515 = vmatpush.msra.mxu0 %v364
        %516 = vmatmul.f32.gmra.mxu0 %v412
        %v517 = vpop.f32.mrf.mxu0
        %v518 = vadd.f32 %v430, %v517
        %519 = vmatmul.f32.gmra.mxu0 %v413
        %v520 = vpop.f32.mrf.mxu0
        %v521 = vadd.f32 %v430, %v520
        %522 = vmatmul.f32.gmra.mxu0 %v414
        %v523 = vpop.f32.mrf.mxu0
        %v524 = vadd.f32 %v430, %v523
        %525 = vmatmul.f32.gmra.mxu0 %v415
        %v526 = vpop.f32.mrf.mxu0
        %v527 = vadd.f32 %v430, %v526
        %528 = vmatmul.f32.gmra.mxu0 %v416
        %v529 = vpop.f32.mrf.mxu0
        %v530 = vadd.f32 %v430, %v529
        %531 = vmatmul.f32.gmra.mxu0 %v417
        %v532 = vpop.f32.mrf.mxu0
        %v533 = vadd.f32 %v430, %v532
        %534 = vmatmul.f32.gmra.mxu0 %v418
        %v535 = vpop.f32.mrf.mxu0
        %v536 = vadd.f32 %v430, %v535
        %537 = vmatmul.f32.gmra.mxu0 %v419
        %v538 = vpop.f32.mrf.mxu0
        %v539 = vadd.f32 %v430, %v538
        %540 = vmatmul.f32.gmra.mxu0 %v420
        %v541 = vpop.f32.mrf.mxu0
        %v542 = vadd.f32 %v430, %v541
        %543 = vmatmul.f32.gmra.mxu0 %v421
        %v544 = vpop.f32.mrf.mxu0
        %v545 = vadd.f32 %v430, %v544
        %546 = vmatmul.f32.gmra.mxu0 %v422
        %v547 = vpop.f32.mrf.mxu0
        %v548 = vadd.f32 %v430, %v547
        %549 = vmatmul.f32.gmra.mxu0 %v423
        %v550 = vpop.f32.mrf.mxu0
        %v551 = vadd.f32 %v430, %v550
        %552 = vmatmul.f32.gmra.mxu0 %v424
        %v553 = vpop.f32.mrf.mxu0
        %v554 = vadd.f32 %v430, %v553
        %555 = vmatmul.f32.gmra.mxu0 %v425
        %v556 = vpop.f32.mrf.mxu0
        %v557 = vadd.f32 %v430, %v556
        %558 = vmatmul.f32.gmra.mxu0 %v426
        %v559 = vpop.f32.mrf.mxu0
        %v560 = vadd.f32 %v430, %v559
        %561 = vmatmul.f32.gmra.mxu0 %v427
        %v562 = vpop.f32.mrf.mxu0
        %v563 = vadd.f32 %v430, %v562
        %564 = vdwg.mxu0
        %565 = vmatpush.msra.mxu0 %v410
        %566 = vmatpush.msra.mxu0 %v407
        %567 = vmatpush.msra.mxu0 %v404
        %568 = vmatpush.msra.mxu0 %v401
        %569 = vmatpush.msra.mxu0 %v398
        %570 = vmatpush.msra.mxu0 %v395
        %571 = vmatpush.msra.mxu0 %v392
        %572 = vmatpush.msra.mxu0 %v389
        %573 = vmatpush.msra.mxu0 %v386
        %574 = vmatpush.msra.mxu0 %v383
        %575 = vmatpush.msra.mxu0 %v380
        %576 = vmatpush.msra.mxu0 %v377
        %577 = vmatpush.msra.mxu0 %v374
        %578 = vmatpush.msra.mxu0 %v371
        %579 = vmatpush.msra.mxu0 %v368
        %580 = vmatpush.msra.mxu0 %v365
        %581 = vmatmul.f32.gmra.mxu0 %v412
        %v582 = vpop.f32.mrf.mxu0
        %v583 = vadd.f32 %v431, %v582
        %584 = vmatmul.f32.gmra.mxu0 %v413
        %v585 = vpop.f32.mrf.mxu0
        %v586 = vadd.f32 %v431, %v585
        %587 = vmatmul.f32.gmra.mxu0 %v414
        %v588 = vpop.f32.mrf.mxu0
        %v589 = vadd.f32 %v431, %v588
        %590 = vmatmul.f32.gmra.mxu0 %v415
        %v591 = vpop.f32.mrf.mxu0
        %v592 = vadd.f32 %v431, %v591
        %593 = vmatmul.f32.gmra.mxu0 %v416
        %v594 = vpop.f32.mrf.mxu0
        %v595 = vadd.f32 %v431, %v594
        %596 = vmatmul.f32.gmra.mxu0 %v417
        %v597 = vpop.f32.mrf.mxu0
        %v598 = vadd.f32 %v431, %v597
        %599 = vmatmul.f32.gmra.mxu0 %v418
        %v600 = vpop.f32.mrf.mxu0
        %v601 = vadd.f32 %v431, %v600
        %602 = vmatmul.f32.gmra.mxu0 %v419
        %v603 = vpop.f32.mrf.mxu0
        %v604 = vadd.f32 %v431, %v603
        %605 = vmatmul.f32.gmra.mxu0 %v420
        %v606 = vpop.f32.mrf.mxu0
        %v607 = vadd.f32 %v431, %v606
        %608 = vmatmul.f32.gmra.mxu0 %v421
        %v609 = vpop.f32.mrf.mxu0
        %v610 = vadd.f32 %v431, %v609
        %611 = vmatmul.f32.gmra.mxu0 %v422
        %v612 = vpop.f32.mrf.mxu0
        %v613 = vadd.f32 %v431, %v612
        %614 = vmatmul.f32.gmra.mxu0 %v423
        %v615 = vpop.f32.mrf.mxu0
        %v616 = vadd.f32 %v431, %v615
        %617 = vmatmul.f32.gmra.mxu0 %v424
        %v618 = vpop.f32.mrf.mxu0
        %v619 = vadd.f32 %v431, %v618
        %620 = vmatmul.f32.gmra.mxu0 %v425
        %v621 = vpop.f32.mrf.mxu0
        %v622 = vadd.f32 %v431, %v621
        %623 = vmatmul.f32.gmra.mxu0 %v426
        %v624 = vpop.f32.mrf.mxu0
        %v625 = vadd.f32 %v431, %v624
        %626 = vmatmul.f32.gmra.mxu0 %v427
        %v627 = vpop.f32.mrf.mxu0
        %v628 = vadd.f32 %v431, %v627
        %629 = vdwg.mxu0
        %v630 = vxor.u32 %v453, 2147483648
        %v631 = vxor.u32 %v456, 2147483648
        %v632 = vxor.u32 %v459, 2147483648
        %v633 = vxor.u32 %v462, 2147483648
        %v634 = vxor.u32 %v465, 2147483648
        %v635 = vxor.u32 %v468, 2147483648
        %v636 = vxor.u32 %v471, 2147483648
        %v637 = vxor.u32 %v474, 2147483648
        %v638 = vxor.u32 %v477, 2147483648
        %v639 = vxor.u32 %v480, 2147483648
        %v640 = vxor.u32 %v483, 2147483648
        %v641 = vxor.u32 %v486, 2147483648
        %v642 = vxor.u32 %v489, 2147483648
        %v643 = vxor.u32 %v492, 2147483648
        %v644 = vxor.u32 %v495, 2147483648
        %v645 = vxor.u32 %v498, 2147483648
        %v646 = vmul.f32 %v630, 1.442695
        %v647 = vpow.pop %v646
        %v648 = vmul.f32 %v631, 1.442695
        %v649 = vpow.pop %v648
        %v650 = vmul.f32 %v632, 1.442695
        %v651 = vpow.pop %v650
        %v652 = vmul.f32 %v633, 1.442695
        %v653 = vpow.pop %v652
        %v654 = vmul.f32 %v634, 1.442695
        %v655 = vpow.pop %v654
        %v656 = vmul.f32 %v635, 1.442695
        %v657 = vpow.pop %v656
        %v658 = vmul.f32 %v636, 1.442695
        %v659 = vpow.pop %v658
        %v660 = vmul.f32 %v637, 1.442695
        %v661 = vpow.pop %v660
        %v662 = vmul.f32 %v638, 1.442695
        %v663 = vpow.pop %v662
        %v664 = vmul.f32 %v639, 1.442695
        %v665 = vpow.pop %v664
        %v666 = vmul.f32 %v640, 1.442695
        %v667 = vpow.pop %v666
        %v668 = vmul.f32 %v641, 1.442695
        %v669 = vpow.pop %v668
        %v670 = vmul.f32 %v642, 1.442695
        %v671 = vpow.pop %v670
        %v672 = vmul.f32 %v643, 1.442695
        %v673 = vpow.pop %v672
        %v674 = vmul.f32 %v644, 1.442695
        %v675 = vpow.pop %v674
        %v676 = vmul.f32 %v645, 1.442695
        %v677 = vpow.pop %v676
        %v678 = vadd.f32 %v647, 1.0
        %v679 = vadd.f32 %v649, 1.0
        %v680 = vadd.f32 %v651, 1.0
        %v681 = vadd.f32 %v653, 1.0
        %v682 = vadd.f32 %v655, 1.0
        %v683 = vadd.f32 %v657, 1.0
        %v684 = vadd.f32 %v659, 1.0
        %v685 = vadd.f32 %v661, 1.0
        %v686 = vadd.f32 %v663, 1.0
        %v687 = vadd.f32 %v665, 1.0
        %v688 = vadd.f32 %v667, 1.0
        %v689 = vadd.f32 %v669, 1.0
        %v690 = vadd.f32 %v671, 1.0
        %v691 = vadd.f32 %v673, 1.0
        %v692 = vadd.f32 %v675, 1.0
        %v693 = vadd.f32 %v677, 1.0
        %v694 = vrcp.pop %v678
        %v695 = vmul.f32 %v678, %v694
        %v696 = vsub.f32 1.0, %v695
        %v697 = vmul.f32 %v694, %v696
        %v698 = vadd.f32 %v694, %v697
        %vm699 = vweird.f32 %v678
        %vm700 = vweird.f32 %v694
        %vm701 = vmor %vm699, %vm700
        %v702 = vsel %vm701, %v694, %v698
        %v703 = vand.u32 2147483647, %v678
        %vm704 = vcmp.eq.f32.partialorder %v703, 8.507059e+37
        %v705 = vand.u32 %v678, 2147483648
        %v706 = vor.u32 1.1754944e-38, %v705
        %v707 = vsel %vm704, %v706, %v702
        %v708 = vmul.f32 1.0, %v707
        %v709 = vrcp.pop %v679
        %v710 = vmul.f32 %v679, %v709
        %v711 = vsub.f32 1.0, %v710
        %v712 = vmul.f32 %v709, %v711
        %v713 = vadd.f32 %v709, %v712
        %vm714 = vweird.f32 %v679
        %vm715 = vweird.f32 %v709
        %vm716 = vmor %vm714, %vm715
        %v717 = vsel %vm716, %v709, %v713
        %v718 = vand.u32 2147483647, %v679
        %vm719 = vcmp.eq.f32.partialorder %v718, 8.507059e+37
        %v720 = vand.u32 %v679, 2147483648
        %v721 = vor.u32 1.1754944e-38, %v720
        %v722 = vsel %vm719, %v721, %v717
        %v723 = vmul.f32 1.0, %v722
        %v724 = vrcp.pop %v680
        %v725 = vmul.f32 %v680, %v724
        %v726 = vsub.f32 1.0, %v725
        %v727 = vmul.f32 %v724, %v726
        %v728 = vadd.f32 %v724, %v727
        %vm729 = vweird.f32 %v680
        %vm730 = vweird.f32 %v724
        %vm731 = vmor %vm729, %vm730
        %v732 = vsel %vm731, %v724, %v728
        %v733 = vand.u32 2147483647, %v680
        %vm734 = vcmp.eq.f32.partialorder %v733, 8.507059e+37
        %v735 = vand.u32 %v680, 2147483648
        %v736 = vor.u32 1.1754944e-38, %v735
        %v737 = vsel %vm734, %v736, %v732
        %v738 = vmul.f32 1.0, %v737
        %v739 = vrcp.pop %v681
        %v740 = vmul.f32 %v681, %v739
        %v741 = vsub.f32 1.0, %v740
        %v742 = vmul.f32 %v739, %v741
        %v743 = vadd.f32 %v739, %v742
        %vm744 = vweird.f32 %v681
        %vm745 = vweird.f32 %v739
        %vm746 = vmor %vm744, %vm745
        %v747 = vsel %vm746, %v739, %v743
        %v748 = vand.u32 2147483647, %v681
        %vm749 = vcmp.eq.f32.partialorder %v748, 8.507059e+37
        %v750 = vand.u32 %v681, 2147483648
        %v751 = vor.u32 1.1754944e-38, %v750
        %v752 = vsel %vm749, %v751, %v747
        %v753 = vmul.f32 1.0, %v752
        %v754 = vrcp.pop %v682
        %v755 = vmul.f32 %v682, %v754
        %v756 = vsub.f32 1.0, %v755
        %v757 = vmul.f32 %v754, %v756
        %v758 = vadd.f32 %v754, %v757
        %vm759 = vweird.f32 %v682
        %vm760 = vweird.f32 %v754
        %vm761 = vmor %vm759, %vm760
        %v762 = vsel %vm761, %v754, %v758
        %v763 = vand.u32 2147483647, %v682
        %vm764 = vcmp.eq.f32.partialorder %v763, 8.507059e+37
        %v765 = vand.u32 %v682, 2147483648
        %v766 = vor.u32 1.1754944e-38, %v765
        %v767 = vsel %vm764, %v766, %v762
        %v768 = vmul.f32 1.0, %v767
        %v769 = vrcp.pop %v683
        %v770 = vmul.f32 %v683, %v769
        %v771 = vsub.f32 1.0, %v770
        %v772 = vmul.f32 %v769, %v771
        %v773 = vadd.f32 %v769, %v772
        %vm774 = vweird.f32 %v683
        %vm775 = vweird.f32 %v769
        %vm776 = vmor %vm774, %vm775
        %v777 = vsel %vm776, %v769, %v773
        %v778 = vand.u32 2147483647, %v683
        %vm779 = vcmp.eq.f32.partialorder %v778, 8.507059e+37
        %v780 = vand.u32 %v683, 2147483648
        %v781 = vor.u32 1.1754944e-38, %v780
        %v782 = vsel %vm779, %v781, %v777
        %v783 = vmul.f32 1.0, %v782
        %v784 = vrcp.pop %v684
        %v785 = vmul.f32 %v684, %v784
        %v786 = vsub.f32 1.0, %v785
        %v787 = vmul.f32 %v784, %v786
        %v788 = vadd.f32 %v784, %v787
        %vm789 = vweird.f32 %v684
        %vm790 = vweird.f32 %v784
        %vm791 = vmor %vm789, %vm790
        %v792 = vsel %vm791, %v784, %v788
        %v793 = vand.u32 2147483647, %v684
        %vm794 = vcmp.eq.f32.partialorder %v793, 8.507059e+37
        %v795 = vand.u32 %v684, 2147483648
        %v796 = vor.u32 1.1754944e-38, %v795
        %v797 = vsel %vm794, %v796, %v792
        %v798 = vmul.f32 1.0, %v797
        %v799 = vrcp.pop %v685
        %v800 = vmul.f32 %v685, %v799
        %v801 = vsub.f32 1.0, %v800
        %v802 = vmul.f32 %v799, %v801
        %v803 = vadd.f32 %v799, %v802
        %vm804 = vweird.f32 %v685
        %vm805 = vweird.f32 %v799
        %vm806 = vmor %vm804, %vm805
        %v807 = vsel %vm806, %v799, %v803
        %v808 = vand.u32 2147483647, %v685
        %vm809 = vcmp.eq.f32.partialorder %v808, 8.507059e+37
        %v810 = vand.u32 %v685, 2147483648
        %v811 = vor.u32 1.1754944e-38, %v810
        %v812 = vsel %vm809, %v811, %v807
        %v813 = vmul.f32 1.0, %v812
        %v814 = vrcp.pop %v686
        %v815 = vmul.f32 %v686, %v814
        %v816 = vsub.f32 1.0, %v815
        %v817 = vmul.f32 %v814, %v816
        %v818 = vadd.f32 %v814, %v817
        %vm819 = vweird.f32 %v686
        %vm820 = vweird.f32 %v814
        %vm821 = vmor %vm819, %vm820
        %v822 = vsel %vm821, %v814, %v818
        %v823 = vand.u32 2147483647, %v686
        %vm824 = vcmp.eq.f32.partialorder %v823, 8.507059e+37
        %v825 = vand.u32 %v686, 2147483648
        %v826 = vor.u32 1.1754944e-38, %v825
        %v827 = vsel %vm824, %v826, %v822
        %v828 = vmul.f32 1.0, %v827
        %v829 = vrcp.pop %v687
        %v830 = vmul.f32 %v687, %v829
        %v831 = vsub.f32 1.0, %v830
        %v832 = vmul.f32 %v829, %v831
        %v833 = vadd.f32 %v829, %v832
        %vm834 = vweird.f32 %v687
        %vm835 = vweird.f32 %v829
        %vm836 = vmor %vm834, %vm835
        %v837 = vsel %vm836, %v829, %v833
        %v838 = vand.u32 2147483647, %v687
        %vm839 = vcmp.eq.f32.partialorder %v838, 8.507059e+37
        %v840 = vand.u32 %v687, 2147483648
        %v841 = vor.u32 1.1754944e-38, %v840
        %v842 = vsel %vm839, %v841, %v837
        %v843 = vmul.f32 1.0, %v842
        %v844 = vrcp.pop %v688
        %v845 = vmul.f32 %v688, %v844
        %v846 = vsub.f32 1.0, %v845
        %v847 = vmul.f32 %v844, %v846
        %v848 = vadd.f32 %v844, %v847
        %vm849 = vweird.f32 %v688
        %vm850 = vweird.f32 %v844
        %vm851 = vmor %vm849, %vm850
        %v852 = vsel %vm851, %v844, %v848
        %v853 = vand.u32 2147483647, %v688
        %vm854 = vcmp.eq.f32.partialorder %v853, 8.507059e+37
        %v855 = vand.u32 %v688, 2147483648
        %v856 = vor.u32 1.1754944e-38, %v855
        %v857 = vsel %vm854, %v856, %v852
        %v858 = vmul.f32 1.0, %v857
        %v859 = vrcp.pop %v689
        %v860 = vmul.f32 %v689, %v859
        %v861 = vsub.f32 1.0, %v860
        %v862 = vmul.f32 %v859, %v861
        %v863 = vadd.f32 %v859, %v862
        %vm864 = vweird.f32 %v689
        %vm865 = vweird.f32 %v859
        %vm866 = vmor %vm864, %vm865
        %v867 = vsel %vm866, %v859, %v863
        %v868 = vand.u32 2147483647, %v689
        %vm869 = vcmp.eq.f32.partialorder %v868, 8.507059e+37
        %v870 = vand.u32 %v689, 2147483648
        %v871 = vor.u32 1.1754944e-38, %v870
        %v872 = vsel %vm869, %v871, %v867
        %v873 = vmul.f32 1.0, %v872
        %v874 = vrcp.pop %v690
        %v875 = vmul.f32 %v690, %v874
        %v876 = vsub.f32 1.0, %v875
        %v877 = vmul.f32 %v874, %v876
        %v878 = vadd.f32 %v874, %v877
        %vm879 = vweird.f32 %v690
        %vm880 = vweird.f32 %v874
        %vm881 = vmor %vm879, %vm880
        %v882 = vsel %vm881, %v874, %v878
        %v883 = vand.u32 2147483647, %v690
        %vm884 = vcmp.eq.f32.partialorder %v883, 8.507059e+37
        %v885 = vand.u32 %v690, 2147483648
        %v886 = vor.u32 1.1754944e-38, %v885
        %v887 = vsel %vm884, %v886, %v882
        %v888 = vmul.f32 1.0, %v887
        %v889 = vrcp.pop %v691
        %v890 = vmul.f32 %v691, %v889
        %v891 = vsub.f32 1.0, %v890
        %v892 = vmul.f32 %v889, %v891
        %v893 = vadd.f32 %v889, %v892
        %vm894 = vweird.f32 %v691
        %vm895 = vweird.f32 %v889
        %vm896 = vmor %vm894, %vm895
        %v897 = vsel %vm896, %v889, %v893
        %v898 = vand.u32 2147483647, %v691
        %vm899 = vcmp.eq.f32.partialorder %v898, 8.507059e+37
        %v900 = vand.u32 %v691, 2147483648
        %v901 = vor.u32 1.1754944e-38, %v900
        %v902 = vsel %vm899, %v901, %v897
        %v903 = vmul.f32 1.0, %v902
        %v904 = vrcp.pop %v692
        %v905 = vmul.f32 %v692, %v904
        %v906 = vsub.f32 1.0, %v905
        %v907 = vmul.f32 %v904, %v906
        %v908 = vadd.f32 %v904, %v907
        %vm909 = vweird.f32 %v692
        %vm910 = vweird.f32 %v904
        %vm911 = vmor %vm909, %vm910
        %v912 = vsel %vm911, %v904, %v908
        %v913 = vand.u32 2147483647, %v692
        %vm914 = vcmp.eq.f32.partialorder %v913, 8.507059e+37
        %v915 = vand.u32 %v692, 2147483648
        %v916 = vor.u32 1.1754944e-38, %v915
        %v917 = vsel %vm914, %v916, %v912
        %v918 = vmul.f32 1.0, %v917
        %v919 = vrcp.pop %v693
        %v920 = vmul.f32 %v693, %v919
        %v921 = vsub.f32 1.0, %v920
        %v922 = vmul.f32 %v919, %v921
        %v923 = vadd.f32 %v919, %v922
        %vm924 = vweird.f32 %v693
        %vm925 = vweird.f32 %v919
        %vm926 = vmor %vm924, %vm925
        %v927 = vsel %vm926, %v919, %v923
        %v928 = vand.u32 2147483647, %v693
        %vm929 = vcmp.eq.f32.partialorder %v928, 8.507059e+37
        %v930 = vand.u32 %v693, 2147483648
        %v931 = vor.u32 1.1754944e-38, %v930
        %v932 = vsel %vm929, %v931, %v927
        %v933 = vmul.f32 1.0, %v932
        %v934 = vxor.u32 %v518, 2147483648
        %v935 = vxor.u32 %v521, 2147483648
        %v936 = vxor.u32 %v524, 2147483648
        %v937 = vxor.u32 %v527, 2147483648
        %v938 = vxor.u32 %v530, 2147483648
        %v939 = vxor.u32 %v533, 2147483648
        %v940 = vxor.u32 %v536, 2147483648
        %v941 = vxor.u32 %v539, 2147483648
        %v942 = vxor.u32 %v542, 2147483648
        %v943 = vxor.u32 %v545, 2147483648
        %v944 = vxor.u32 %v548, 2147483648
        %v945 = vxor.u32 %v551, 2147483648
        %v946 = vxor.u32 %v554, 2147483648
        %v947 = vxor.u32 %v557, 2147483648
        %v948 = vxor.u32 %v560, 2147483648
        %v949 = vxor.u32 %v563, 2147483648
        %v950 = vmul.f32 %v934, 1.442695
        %v951 = vpow.pop %v950
        %v952 = vmul.f32 %v935, 1.442695
        %v953 = vpow.pop %v952
        %v954 = vmul.f32 %v936, 1.442695
        %v955 = vpow.pop %v954
        %v956 = vmul.f32 %v937, 1.442695
        %v957 = vpow.pop %v956
        %v958 = vmul.f32 %v938, 1.442695
        %v959 = vpow.pop %v958
        %v960 = vmul.f32 %v939, 1.442695
        %v961 = vpow.pop %v960
        %v962 = vmul.f32 %v940, 1.442695
        %v963 = vpow.pop %v962
        %v964 = vmul.f32 %v941, 1.442695
        %v965 = vpow.pop %v964
        %v966 = vmul.f32 %v942, 1.442695
        %v967 = vpow.pop %v966
        %v968 = vmul.f32 %v943, 1.442695
        %v969 = vpow.pop %v968
        %v970 = vmul.f32 %v944, 1.442695
        %v971 = vpow.pop %v970
        %v972 = vmul.f32 %v945, 1.442695
        %v973 = vpow.pop %v972
        %v974 = vmul.f32 %v946, 1.442695
        %v975 = vpow.pop %v974
        %v976 = vmul.f32 %v947, 1.442695
        %v977 = vpow.pop %v976
        %v978 = vmul.f32 %v948, 1.442695
        %v979 = vpow.pop %v978
        %v980 = vmul.f32 %v949, 1.442695
        %v981 = vpow.pop %v980
        %v982 = vadd.f32 %v951, 1.0
        %v983 = vadd.f32 %v953, 1.0
        %v984 = vadd.f32 %v955, 1.0
        %v985 = vadd.f32 %v957, 1.0
        %v986 = vadd.f32 %v959, 1.0
        %v987 = vadd.f32 %v961, 1.0
        %v988 = vadd.f32 %v963, 1.0
        %v989 = vadd.f32 %v965, 1.0
        %v990 = vadd.f32 %v967, 1.0
        %v991 = vadd.f32 %v969, 1.0
        %v992 = vadd.f32 %v971, 1.0
        %v993 = vadd.f32 %v973, 1.0
        %v994 = vadd.f32 %v975, 1.0
        %v995 = vadd.f32 %v977, 1.0
        %v996 = vadd.f32 %v979, 1.0
        %v997 = vadd.f32 %v981, 1.0
        %v998 = vrcp.pop %v982
        %v999 = vmul.f32 %v982, %v998
        %v1000 = vsub.f32 1.0, %v999
        %v1001 = vmul.f32 %v998, %v1000
        %v1002 = vadd.f32 %v998, %v1001
        %vm1003 = vweird.f32 %v982
        %vm1004 = vweird.f32 %v998
        %vm1005 = vmor %vm1003, %vm1004
        %v1006 = vsel %vm1005, %v998, %v1002
        %v1007 = vand.u32 2147483647, %v982
        %vm1008 = vcmp.eq.f32.partialorder %v1007, 8.507059e+37
        %v1009 = vand.u32 %v982, 2147483648
        %v1010 = vor.u32 1.1754944e-38, %v1009
        %v1011 = vsel %vm1008, %v1010, %v1006
        %v1012 = vmul.f32 1.0, %v1011
        %v1013 = vrcp.pop %v983
        %v1014 = vmul.f32 %v983, %v1013
        %v1015 = vsub.f32 1.0, %v1014
        %v1016 = vmul.f32 %v1013, %v1015
        %v1017 = vadd.f32 %v1013, %v1016
        %vm1018 = vweird.f32 %v983
        %vm1019 = vweird.f32 %v1013
        %vm1020 = vmor %vm1018, %vm1019
        %v1021 = vsel %vm1020, %v1013, %v1017
        %v1022 = vand.u32 2147483647, %v983
        %vm1023 = vcmp.eq.f32.partialorder %v1022, 8.507059e+37
        %v1024 = vand.u32 %v983, 2147483648
        %v1025 = vor.u32 1.1754944e-38, %v1024
        %v1026 = vsel %vm1023, %v1025, %v1021
        %v1027 = vmul.f32 1.0, %v1026
        %v1028 = vrcp.pop %v984
        %v1029 = vmul.f32 %v984, %v1028
        %v1030 = vsub.f32 1.0, %v1029
        %v1031 = vmul.f32 %v1028, %v1030
        %v1032 = vadd.f32 %v1028, %v1031
        %vm1033 = vweird.f32 %v984
        %vm1034 = vweird.f32 %v1028
        %vm1035 = vmor %vm1033, %vm1034
        %v1036 = vsel %vm1035, %v1028, %v1032
        %v1037 = vand.u32 2147483647, %v984
        %vm1038 = vcmp.eq.f32.partialorder %v1037, 8.507059e+37
        %v1039 = vand.u32 %v984, 2147483648
        %v1040 = vor.u32 1.1754944e-38, %v1039
        %v1041 = vsel %vm1038, %v1040, %v1036
        %v1042 = vmul.f32 1.0, %v1041
        %v1043 = vrcp.pop %v985
        %v1044 = vmul.f32 %v985, %v1043
        %v1045 = vsub.f32 1.0, %v1044
        %v1046 = vmul.f32 %v1043, %v1045
        %v1047 = vadd.f32 %v1043, %v1046
        %vm1048 = vweird.f32 %v985
        %vm1049 = vweird.f32 %v1043
        %vm1050 = vmor %vm1048, %vm1049
        %v1051 = vsel %vm1050, %v1043, %v1047
        %v1052 = vand.u32 2147483647, %v985
        %vm1053 = vcmp.eq.f32.partialorder %v1052, 8.507059e+37
        %v1054 = vand.u32 %v985, 2147483648
        %v1055 = vor.u32 1.1754944e-38, %v1054
        %v1056 = vsel %vm1053, %v1055, %v1051
        %v1057 = vmul.f32 1.0, %v1056
        %v1058 = vrcp.pop %v986
        %v1059 = vmul.f32 %v986, %v1058
        %v1060 = vsub.f32 1.0, %v1059
        %v1061 = vmul.f32 %v1058, %v1060
        %v1062 = vadd.f32 %v1058, %v1061
        %vm1063 = vweird.f32 %v986
        %vm1064 = vweird.f32 %v1058
        %vm1065 = vmor %vm1063, %vm1064
        %v1066 = vsel %vm1065, %v1058, %v1062
        %v1067 = vand.u32 2147483647, %v986
        %vm1068 = vcmp.eq.f32.partialorder %v1067, 8.507059e+37
        %v1069 = vand.u32 %v986, 2147483648
        %v1070 = vor.u32 1.1754944e-38, %v1069
        %v1071 = vsel %vm1068, %v1070, %v1066
        %v1072 = vmul.f32 1.0, %v1071
        %v1073 = vrcp.pop %v987
        %v1074 = vmul.f32 %v987, %v1073
        %v1075 = vsub.f32 1.0, %v1074
        %v1076 = vmul.f32 %v1073, %v1075
        %v1077 = vadd.f32 %v1073, %v1076
        %vm1078 = vweird.f32 %v987
        %vm1079 = vweird.f32 %v1073
        %vm1080 = vmor %vm1078, %vm1079
        %v1081 = vsel %vm1080, %v1073, %v1077
        %v1082 = vand.u32 2147483647, %v987
        %vm1083 = vcmp.eq.f32.partialorder %v1082, 8.507059e+37
        %v1084 = vand.u32 %v987, 2147483648
        %v1085 = vor.u32 1.1754944e-38, %v1084
        %v1086 = vsel %vm1083, %v1085, %v1081
        %v1087 = vmul.f32 1.0, %v1086
        %v1088 = vrcp.pop %v988
        %v1089 = vmul.f32 %v988, %v1088
        %v1090 = vsub.f32 1.0, %v1089
        %v1091 = vmul.f32 %v1088, %v1090
        %v1092 = vadd.f32 %v1088, %v1091
        %vm1093 = vweird.f32 %v988
        %vm1094 = vweird.f32 %v1088
        %vm1095 = vmor %vm1093, %vm1094
        %v1096 = vsel %vm1095, %v1088, %v1092
        %v1097 = vand.u32 2147483647, %v988
        %vm1098 = vcmp.eq.f32.partialorder %v1097, 8.507059e+37
        %v1099 = vand.u32 %v988, 2147483648
        %v1100 = vor.u32 1.1754944e-38, %v1099
        %v1101 = vsel %vm1098, %v1100, %v1096
        %v1102 = vmul.f32 1.0, %v1101
        %v1103 = vrcp.pop %v989
        %v1104 = vmul.f32 %v989, %v1103
        %v1105 = vsub.f32 1.0, %v1104
        %v1106 = vmul.f32 %v1103, %v1105
        %v1107 = vadd.f32 %v1103, %v1106
        %vm1108 = vweird.f32 %v989
        %vm1109 = vweird.f32 %v1103
        %vm1110 = vmor %vm1108, %vm1109
        %v1111 = vsel %vm1110, %v1103, %v1107
        %v1112 = vand.u32 2147483647, %v989
        %vm1113 = vcmp.eq.f32.partialorder %v1112, 8.507059e+37
        %v1114 = vand.u32 %v989, 2147483648
        %v1115 = vor.u32 1.1754944e-38, %v1114
        %v1116 = vsel %vm1113, %v1115, %v1111
        %v1117 = vmul.f32 1.0, %v1116
        %v1118 = vrcp.pop %v990
        %v1119 = vmul.f32 %v990, %v1118
        %v1120 = vsub.f32 1.0, %v1119
        %v1121 = vmul.f32 %v1118, %v1120
        %v1122 = vadd.f32 %v1118, %v1121
        %vm1123 = vweird.f32 %v990
        %vm1124 = vweird.f32 %v1118
        %vm1125 = vmor %vm1123, %vm1124
        %v1126 = vsel %vm1125, %v1118, %v1122
        %v1127 = vand.u32 2147483647, %v990
        %vm1128 = vcmp.eq.f32.partialorder %v1127, 8.507059e+37
        %v1129 = vand.u32 %v990, 2147483648
        %v1130 = vor.u32 1.1754944e-38, %v1129
        %v1131 = vsel %vm1128, %v1130, %v1126
        %v1132 = vmul.f32 1.0, %v1131
        %v1133 = vrcp.pop %v991
        %v1134 = vmul.f32 %v991, %v1133
        %v1135 = vsub.f32 1.0, %v1134
        %v1136 = vmul.f32 %v1133, %v1135
        %v1137 = vadd.f32 %v1133, %v1136
        %vm1138 = vweird.f32 %v991
        %vm1139 = vweird.f32 %v1133
        %vm1140 = vmor %vm1138, %vm1139
        %v1141 = vsel %vm1140, %v1133, %v1137
        %v1142 = vand.u32 2147483647, %v991
        %vm1143 = vcmp.eq.f32.partialorder %v1142, 8.507059e+37
        %v1144 = vand.u32 %v991, 2147483648
        %v1145 = vor.u32 1.1754944e-38, %v1144
        %v1146 = vsel %vm1143, %v1145, %v1141
        %v1147 = vmul.f32 1.0, %v1146
        %v1148 = vrcp.pop %v992
        %v1149 = vmul.f32 %v992, %v1148
        %v1150 = vsub.f32 1.0, %v1149
        %v1151 = vmul.f32 %v1148, %v1150
        %v1152 = vadd.f32 %v1148, %v1151
        %vm1153 = vweird.f32 %v992
        %vm1154 = vweird.f32 %v1148
        %vm1155 = vmor %vm1153, %vm1154
        %v1156 = vsel %vm1155, %v1148, %v1152
        %v1157 = vand.u32 2147483647, %v992
        %vm1158 = vcmp.eq.f32.partialorder %v1157, 8.507059e+37
        %v1159 = vand.u32 %v992, 2147483648
        %v1160 = vor.u32 1.1754944e-38, %v1159
        %v1161 = vsel %vm1158, %v1160, %v1156
        %v1162 = vmul.f32 1.0, %v1161
        %v1163 = vrcp.pop %v993
        %v1164 = vmul.f32 %v993, %v1163
        %v1165 = vsub.f32 1.0, %v1164
        %v1166 = vmul.f32 %v1163, %v1165
        %v1167 = vadd.f32 %v1163, %v1166
        %vm1168 = vweird.f32 %v993
        %vm1169 = vweird.f32 %v1163
        %vm1170 = vmor %vm1168, %vm1169
        %v1171 = vsel %vm1170, %v1163, %v1167
        %v1172 = vand.u32 2147483647, %v993
        %vm1173 = vcmp.eq.f32.partialorder %v1172, 8.507059e+37
        %v1174 = vand.u32 %v993, 2147483648
        %v1175 = vor.u32 1.1754944e-38, %v1174
        %v1176 = vsel %vm1173, %v1175, %v1171
        %v1177 = vmul.f32 1.0, %v1176
        %v1178 = vrcp.pop %v994
        %v1179 = vmul.f32 %v994, %v1178
        %v1180 = vsub.f32 1.0, %v1179
        %v1181 = vmul.f32 %v1178, %v1180
        %v1182 = vadd.f32 %v1178, %v1181
        %vm1183 = vweird.f32 %v994
        %vm1184 = vweird.f32 %v1178
        %vm1185 = vmor %vm1183, %vm1184
        %v1186 = vsel %vm1185, %v1178, %v1182
        %v1187 = vand.u32 2147483647, %v994
        %vm1188 = vcmp.eq.f32.partialorder %v1187, 8.507059e+37
        %v1189 = vand.u32 %v994, 2147483648
        %v1190 = vor.u32 1.1754944e-38, %v1189
        %v1191 = vsel %vm1188, %v1190, %v1186
        %v1192 = vmul.f32 1.0, %v1191
        %v1193 = vrcp.pop %v995
        %v1194 = vmul.f32 %v995, %v1193
        %v1195 = vsub.f32 1.0, %v1194
        %v1196 = vmul.f32 %v1193, %v1195
        %v1197 = vadd.f32 %v1193, %v1196
        %vm1198 = vweird.f32 %v995
        %vm1199 = vweird.f32 %v1193
        %vm1200 = vmor %vm1198, %vm1199
        %v1201 = vsel %vm1200, %v1193, %v1197
        %v1202 = vand.u32 2147483647, %v995
        %vm1203 = vcmp.eq.f32.partialorder %v1202, 8.507059e+37
        %v1204 = vand.u32 %v995, 2147483648
        %v1205 = vor.u32 1.1754944e-38, %v1204
        %v1206 = vsel %vm1203, %v1205, %v1201
        %v1207 = vmul.f32 1.0, %v1206
        %v1208 = vrcp.pop %v996
        %v1209 = vmul.f32 %v996, %v1208
        %v1210 = vsub.f32 1.0, %v1209
        %v1211 = vmul.f32 %v1208, %v1210
        %v1212 = vadd.f32 %v1208, %v1211
        %vm1213 = vweird.f32 %v996
        %vm1214 = vweird.f32 %v1208
        %vm1215 = vmor %vm1213, %vm1214
        %v1216 = vsel %vm1215, %v1208, %v1212
        %v1217 = vand.u32 2147483647, %v996
        %vm1218 = vcmp.eq.f32.partialorder %v1217, 8.507059e+37
        %v1219 = vand.u32 %v996, 2147483648
        %v1220 = vor.u32 1.1754944e-38, %v1219
        %v1221 = vsel %vm1218, %v1220, %v1216
        %v1222 = vmul.f32 1.0, %v1221
        %v1223 = vrcp.pop %v997
        %v1224 = vmul.f32 %v997, %v1223
        %v1225 = vsub.f32 1.0, %v1224
        %v1226 = vmul.f32 %v1223, %v1225
        %v1227 = vadd.f32 %v1223, %v1226
        %vm1228 = vweird.f32 %v997
        %vm1229 = vweird.f32 %v1223
        %vm1230 = vmor %vm1228, %vm1229
        %v1231 = vsel %vm1230, %v1223, %v1227
        %v1232 = vand.u32 2147483647, %v997
        %vm1233 = vcmp.eq.f32.partialorder %v1232, 8.507059e+37
        %v1234 = vand.u32 %v997, 2147483648
        %v1235 = vor.u32 1.1754944e-38, %v1234
        %v1236 = vsel %vm1233, %v1235, %v1231
        %v1237 = vmul.f32 1.0, %v1236
        %v1238 = vtanh.pop %v583
        %v1239 = vtanh.pop %v586
        %v1240 = vtanh.pop %v589
        %v1241 = vtanh.pop %v592
        %v1242 = vtanh.pop %v595
        %v1243 = vtanh.pop %v598
        %v1244 = vtanh.pop %v601
        %v1245 = vtanh.pop %v604
        %v1246 = vtanh.pop %v607
        %v1247 = vtanh.pop %v610
        %v1248 = vtanh.pop %v613
        %v1249 = vtanh.pop %v616
        %v1250 = vtanh.pop %v619
        %v1251 = vtanh.pop %v622
        %v1252 = vtanh.pop %v625
        %v1253 = vtanh.pop %v628
        %v1254 = vmul.f32 %v708, %v1238
        %v1255 = vmul.f32 %v723, %v1239
        %v1256 = vmul.f32 %v738, %v1240
        %v1257 = vmul.f32 %v753, %v1241
        %v1258 = vmul.f32 %v768, %v1242
        %v1259 = vmul.f32 %v783, %v1243
        %v1260 = vmul.f32 %v798, %v1244
        %v1261 = vmul.f32 %v813, %v1245
        %v1262 = vmul.f32 %v828, %v1246
        %v1263 = vmul.f32 %v843, %v1247
        %v1264 = vmul.f32 %v858, %v1248
        %v1265 = vmul.f32 %v873, %v1249
        %v1266 = vmul.f32 %v888, %v1250
        %v1267 = vmul.f32 %v903, %v1251
        %v1268 = vmul.f32 %v918, %v1252
        %v1269 = vmul.f32 %v933, %v1253
        %v1270 = vld [vmem:[%s285] sm:$0xff]
        %v1271 = vld [vmem:[%s285 + $0x8] sm:$0xff]
        %v1272 = vld [vmem:[%s285 + $0x10] sm:$0xff]
        %v1273 = vld [vmem:[%s285 + $0x18] sm:$0xff]
        %v1274 = vld [vmem:[%s285 + $0x20] sm:$0xff]
        %v1275 = vld [vmem:[%s285 + $0x28] sm:$0xff]
        %v1276 = vld [vmem:[%s285 + $0x30] sm:$0xff]
        %v1277 = vld [vmem:[%s285 + $0x38] sm:$0xff]
        %v1278 = vld [vmem:[%s285 + $0x40] sm:$0xff]
        %v1279 = vld [vmem:[%s285 + $0x48] sm:$0xff]
        %v1280 = vld [vmem:[%s285 + $0x50] sm:$0xff]
        %v1281 = vld [vmem:[%s285 + $0x58] sm:$0xff]
        %v1282 = vld [vmem:[%s285 + $0x60] sm:$0xff]
        %v1283 = vld [vmem:[%s285 + $0x68] sm:$0xff]
        %v1284 = vld [vmem:[%s285 + $0x70] sm:$0xff]
        %v1285 = vld [vmem:[%s285 + $0x78] sm:$0xff]
        %v1286 = vmul.f32 %v1012, %v1270
        %v1287 = vmul.f32 %v1027, %v1271
        %v1288 = vmul.f32 %v1042, %v1272
        %v1289 = vmul.f32 %v1057, %v1273
        %v1290 = vmul.f32 %v1072, %v1274
        %v1291 = vmul.f32 %v1087, %v1275
        %v1292 = vmul.f32 %v1102, %v1276
        %v1293 = vmul.f32 %v1117, %v1277
        %v1294 = vmul.f32 %v1132, %v1278
        %v1295 = vmul.f32 %v1147, %v1279
        %v1296 = vmul.f32 %v1162, %v1280
        %v1297 = vmul.f32 %v1177, %v1281
        %v1298 = vmul.f32 %v1192, %v1282
        %v1299 = vmul.f32 %v1207, %v1283
        %v1300 = vmul.f32 %v1222, %v1284
        %v1301 = vmul.f32 %v1237, %v1285
        %v1302 = vadd.f32 %v1254, %v1286
        %v1303 = vadd.f32 %v1255, %v1287
        %v1304 = vadd.f32 %v1256, %v1288
        %v1305 = vadd.f32 %v1257, %v1289
        %v1306 = vadd.f32 %v1258, %v1290
        %v1307 = vadd.f32 %v1259, %v1291
        %v1308 = vadd.f32 %v1260, %v1292
        %v1309 = vadd.f32 %v1261, %v1293
        %v1310 = vadd.f32 %v1262, %v1294
        %v1311 = vadd.f32 %v1263, %v1295
        %v1312 = vadd.f32 %v1264, %v1296
        %v1313 = vadd.f32 %v1265, %v1297
        %v1314 = vadd.f32 %v1266, %v1298
        %v1315 = vadd.f32 %v1267, %v1299
        %v1316 = vadd.f32 %v1268, %v1300
        %v1317 = vadd.f32 %v1269, %v1301
        %1318 = vst [vmem:[%s335] sm:$0xff] %v1302
        %1319 = vst [vmem:[%s335 + $0x8] sm:$0xff] %v1303
        %1320 = vst [vmem:[%s335 + $0x10] sm:$0xff] %v1304
        %1321 = vst [vmem:[%s335 + $0x18] sm:$0xff] %v1305
        %1322 = vst [vmem:[%s335 + $0x20] sm:$0xff] %v1306
        %1323 = vst [vmem:[%s335 + $0x28] sm:$0xff] %v1307
        %1324 = vst [vmem:[%s335 + $0x30] sm:$0xff] %v1308
        %1325 = vst [vmem:[%s335 + $0x38] sm:$0xff] %v1309
        %1326 = vst [vmem:[%s335 + $0x40] sm:$0xff] %v1310
        %1327 = vst [vmem:[%s335 + $0x48] sm:$0xff] %v1311
        %1328 = vst [vmem:[%s335 + $0x50] sm:$0xff] %v1312
        %1329 = vst [vmem:[%s335 + $0x58] sm:$0xff] %v1313
        %1330 = vst [vmem:[%s335 + $0x60] sm:$0xff] %v1314
        %1331 = vst [vmem:[%s335 + $0x68] sm:$0xff] %v1315
        %1332 = vst [vmem:[%s335 + $0x70] sm:$0xff] %v1316
        %1333 = vst [vmem:[%s335 + $0x78] sm:$0xff] %v1317
        %v1334 = vtanh.pop %v1302
        %v1335 = vtanh.pop %v1303
        %v1336 = vtanh.pop %v1304
        %v1337 = vtanh.pop %v1305
        %v1338 = vtanh.pop %v1306
        %v1339 = vtanh.pop %v1307
        %v1340 = vtanh.pop %v1308
        %v1341 = vtanh.pop %v1309
        %v1342 = vtanh.pop %v1310
        %v1343 = vtanh.pop %v1311
        %v1344 = vtanh.pop %v1312
        %v1345 = vtanh.pop %v1313
        %v1346 = vtanh.pop %v1314
        %v1347 = vtanh.pop %v1315
        %v1348 = vtanh.pop %v1316
        %v1349 = vtanh.pop %v1317
        %1350 = vst [vmem:[%s342] sm:$0xff] %v1334
        %1351 = vst [vmem:[%s342 + $0x8] sm:$0xff] %v1335
        %1352 = vst [vmem:[%s342 + $0x10] sm:$0xff] %v1336
        %1353 = vst [vmem:[%s342 + $0x18] sm:$0xff] %v1337
        %1354 = vst [vmem:[%s342 + $0x20] sm:$0xff] %v1338
        %1355 = vst [vmem:[%s342 + $0x28] sm:$0xff] %v1339
        %1356 = vst [vmem:[%s342 + $0x30] sm:$0xff] %v1340
        %1357 = vst [vmem:[%s342 + $0x38] sm:$0xff] %v1341
        %1358 = vst [vmem:[%s342 + $0x40] sm:$0xff] %v1342
        %1359 = vst [vmem:[%s342 + $0x48] sm:$0xff] %v1343
        %1360 = vst [vmem:[%s342 + $0x50] sm:$0xff] %v1344
        %1361 = vst [vmem:[%s342 + $0x58] sm:$0xff] %v1345
        %1362 = vst [vmem:[%s342 + $0x60] sm:$0xff] %v1346
        %1363 = vst [vmem:[%s342 + $0x68] sm:$0xff] %v1347
        %1364 = vst [vmem:[%s342 + $0x70] sm:$0xff] %v1348
        %1365 = vst [vmem:[%s342 + $0x78] sm:$0xff] %v1349
        %s1366 = sand.u32 %s132, 1
        %s1367 = scalar_lea.sflag [#allocation4], %s1366
        %s1368 = sand.u32 %s132, 1
        %s1369 = smul.addr %s1368, 128
        %s1370 = scalar_lea.vmem [#allocation10], %s1369
        %s1371 = sand.u32 %s158, 1
        %s1372 = scalar_lea.sflag [#allocation12], %s1371
        %s1373 = sand.u32 %s158, 1
        %s1374 = smul.addr %s1373, 128
        %s1375 = scalar_lea.vmem [#allocation11], %s1374
        // Predicated region
        $region53: #{call.1} parent=35 // pred_check
          %p1376 = pneg %p142
        $region54: #{call.1} parent=35 // pred_check_branch
          %1378 = sbr.rel (%p1376) target = $region56
        $region55: #{call.1} parent=35 // pred_region
          %s1379 = smul.u32 16, %s30
          %s1380 = ssub.s32 25, %s1379
          %p1381 = scmp.lt.s32.totalorder %s1380, 16
          %s1382 = scalar_select %p1381, %s1380, 16
          %s1383 = smul.u32 8, %s1382
          %s1384 = ssub.s32 128, %s1383
          %s1385 = sshll.u32 %s1384, 4
          %1386 = vsyncadd %s1367, %s1385
          %p1387 = scmp.ne.s32.totalorder 0, %s1383
          %s1388 = smul.addr %s1379, 8
          %s1389 = scalar_lea.hbm %s4, %s1388
          %s1390 = smul.u32 8, %s1382
          %s1391 = sshll.u32 %s1370, 4
          %s1392 = int_to_ptr.vmem [resolvable:$true] %s1391
          %s1393 = sshll.u32 %s1389, 4
          %s1394 = int_to_ptr.hbm [resolvable:$true] %s1393
          %s1395 = sshll.u32 %s1390, 4
          %1399 = dma.vmem_to_hbm [thread:$0]  (%p1387), %s1392, %s1395, %s1394, %s1367, 128, 128, 8
        $region56: #{call.1} parent=35 // pred_fallthru
          _
        // Predicated region
        $region57: #{call.1} parent=35 // pred_check
          %p1400 = pneg %p168
        $region58: #{call.1} parent=35 // pred_check_branch
          %1402 = sbr.rel (%p1400) target = $region60
        $region59: #{call.1} parent=35 // pred_region
          %s1403 = smul.u32 16, %s30
          %s1404 = ssub.s32 25, %s1403
          %p1405 = scmp.lt.s32.totalorder %s1404, 16
          %s1406 = scalar_select %p1405, %s1404, 16
          %s1407 = smul.u32 8, %s1406
          %s1408 = ssub.s32 128, %s1407
          %s1409 = sshll.u32 %s1408, 4
          %1410 = vsyncadd %s1372, %s1409
          %p1411 = scmp.ne.s32.totalorder 0, %s1407
          %s1412 = smul.addr %s1403, 8
          %s1413 = scalar_lea.hbm %s5, %s1412
          %s1414 = smul.u32 8, %s1406
          %s1415 = sshll.u32 %s1375, 4
          %s1416 = int_to_ptr.vmem [resolvable:$true] %s1415
          %s1417 = sshll.u32 %s1413, 4
          %s1418 = int_to_ptr.hbm [resolvable:$true] %s1417
          %s1419 = sshll.u32 %s1414, 4
          %1423 = dma.vmem_to_hbm [thread:$0]  (%p1411), %s1416, %s1419, %s1418, %s1372, 128, 128, 8
        $region60: #{call.1} parent=35 // pred_fallthru
          _
      $region36: #{call.1} parent=5 // pred_fallthru
        _
      %p1424 = scmp.le.s32.totalorder 2, %s25
      // Predicated region
      $region61: #{call.1} parent=5 // pred_check
        %p1425 = pneg %p1424
      $region62: #{call.1} parent=5 // pred_check_branch
        %1427 = sbr.rel (%p1425) target = $region64
      $region63: #{call.1} parent=5 // pred_region
        %s1428 = ssub.s32 %s25, 2
        // Predicated region
        $region65: #{call.1} parent=63 // pred_check
          %p1429 = pneg %p148
        $region66: #{call.1} parent=63 // pred_check_branch
          %1431 = sbr.rel (%p1429) target = $region68
        $region67: #{call.1} parent=63 // pred_region
          %s1432 = sand.u32 %s133, 1
          %s1433 = scalar_lea.sflag [#allocation4], %s1432
          %s1434 = sand.u32 %s133, 1
          %s1435 = smul.addr %s1434, 128
          %s1436 = scalar_lea.vmem [#allocation10], %s1435
          %1438 = dma.done %s1433, 2048
        $region68: #{call.1} parent=63 // pred_fallthru
          _
        // Predicated region
        $region69: #{call.1} parent=63 // pred_check
          %p1439 = pneg %p174
        $region70: #{call.1} parent=63 // pred_check_branch
          %1441 = sbr.rel (%p1439) target = $region72
        $region71: #{call.1} parent=63 // pred_region
          %s1442 = sand.u32 %s159, 1
          %s1443 = scalar_lea.sflag [#allocation12], %s1442
          %s1444 = sand.u32 %s159, 1
          %s1445 = smul.addr %s1444, 128
          %s1446 = scalar_lea.vmem [#allocation11], %s1445
          %1448 = dma.done %s1443, 2048
        $region72: #{call.1} parent=63 // pred_fallthru
          _
      $region64: #{call.1} parent=5 // pred_fallthru
        _
    $region6: #{call.1} parent=1 // loop_footer
      %s29 = sadd.s32 1, %s25
    $region7: #{call.1} parent=1 // loop_footer_branch
      %24 = sbr.rel target = $region3
    $region8: #{call.1} parent=1 // loop_exit
      _
    %1449 = vsyncpa [#allocation3], 1
    %s1450 = scalar_lea.sflag [#allocation3], 1
    %1451 = vsyncpa %s1450, 1
    %1452 = vsyncpa [#allocation6], 1
    %s1453 = scalar_lea.sflag [#allocation6], 1
    %1454 = vsyncpa %s1453, 1
    %1455 = vsyncpa [#allocation9], 1
    %1456 = vsyncpa [#allocation4], 1
    %s1457 = scalar_lea.sflag [#allocation4], 1
    %1458 = vsyncpa %s1457, 1
    %1459 = vsyncpa [#allocation12], 1
    %s1460 = scalar_lea.sflag [#allocation12], 1
    %1461 = vsyncpa %s1460, 1

</llo_original>
